<compile_context>
chip_gen: v5e
topology: v5e:2x2
jax: 0.10.0
libtpu: 0.0.40
codegen_flags: <defaults>
</compile_context>

<pallas_src>
import functools

import jax
import jax.numpy as jnp
from jax.experimental import pallas as pl
from jax.experimental.pallas import tpu as pltpu


# ----------------------------------------------------------------------------
# Fused kernel: genlap scales + num_layers GCN layers + masked log_softmax
# ----------------------------------------------------------------------------
def fused_gcn_kernel(scal_ref, adj_ref, d1_ref, x_ref, *rest, num_layers, out_dim):
    # rest = w0, b0, w1, b1, ..., out_ref
    layer_refs = rest[: 2 * num_layers]
    out_ref = rest[2 * num_layers]

    p = scal_ref[0]
    q = scal_ref[1]
    r = scal_ref[2]
    c1 = scal_ref[3]
    c2 = scal_ref[4]
    c3 = scal_ref[5]

    n = adj_ref.shape[0]
    rows = jax.lax.broadcasted_iota(jnp.int32, (n, n), 0)
    cols = jax.lax.broadcasted_iota(jnp.int32, (n, n), 1)
    on_diag = rows == cols

    adj = adj_ref[...]                          # (n, n) f32
    d1 = d1_ref[...]                            # (1, n) f32
    # temp_adj = adj + diag(d1) without materializing an f32 eye matrix
    temp_adj = jnp.where(on_diag, adj + d1, adj)
    temp_adj_bf = temp_adj.astype(jnp.bfloat16)  # MXU-native operand for every layer

    diags = jnp.sum(temp_adj, axis=1, keepdims=True)      # (n, 1) row sums

    def safe_pow(d, e):
        # torch-like d**e for d >= 0 (0**0=1, 0**+e=0, 0**-e=inf); d<0 -> NaN.
        pos = jnp.exp(e * jnp.log(jnp.where(d > 0.0, d, 1.0)))
        zero_case = jnp.where(e == 0.0, 1.0, jnp.where(e > 0.0, 0.0, jnp.inf))
        return jnp.where(d > 0.0, pos, jnp.where(d == 0.0, zero_case, jnp.nan))

    dp = safe_pow(diags, p)                     # (n, 1)
    dq = safe_pow(diags, q)                     # (n, 1)
    dr = safe_pow(diags, r)                     # (n, 1)

    left_scale = c2 * dq                        # fold c2 into the left row-scale
    diag_scale = c1 * dp + c3                   # fold c1*D^p + c3*I into one (n,1) scale

    # --- GCN layers (activations stay resident; gso applied in factored form) --
    h = x_ref[...]                              # (n, f0_pad) f32
    for i in range(num_layers):
        w = layer_refs[2 * i][...]              # bf16 (fin_pad, fout_pad), zero-padded
        b = layer_refs[2 * i + 1][...]          # f32  (1, fout_pad),       zero-padded
        support = jnp.dot(h.astype(jnp.bfloat16), w,
                          preferred_element_type=jnp.float32)           # h @ W
        agg = jnp.dot(temp_adj_bf, (dr * support).astype(jnp.bfloat16),
                      preferred_element_type=jnp.float32)               # T @ (D^r S)
        # gso @ support == (c1*dp + c3) * support + c2*dq * (T @ (dr * support))
        h = left_scale * agg + diag_scale * support + b
        if i < num_layers - 1:
            h = jnp.maximum(h, 0.0)
        # TODO(synk): F.dropout is a no-op in eval mode; training-mode dropout not implemented.

    # --- fused log_softmax over the valid (non-padded) output columns ---------
    f_out = h.shape[1]
    lane = jax.lax.broadcasted_iota(jnp.int32, (n, f_out), 1)
    valid = lane < out_dim
    m = jnp.max(jnp.where(valid, h, -jnp.inf), axis=1, keepdims=True)
    s = h - m
    esum = jnp.sum(jnp.where(valid, jnp.exp(s), 0.0), axis=1, keepdims=True)
    # NOTE: padded lanes (col >= out_dim) hold meaningless values; the wrapper
    # slices them off — never consume the padded slab directly.
    out_ref[...] = s - jnp.log(esum)            # lane-dense (n, f_out) store


# ----------------------------------------------------------------------------
# Wrapper: per-layer lane padding, bf16 weights, one pallas_call
# ----------------------------------------------------------------------------
def gcn_forward(x, adj, weights, biases, genlap_params):
    p, q, r, c1, c2, c3, d1 = genlap_params
    n, input_dim = x.shape
    num_layers = len(weights)
    out_dim = weights[-1].shape[1]

    def lane_pad(d):
        return ((d + 127) // 128) * 128

    dims = [input_dim] + [w.shape[1] for w in weights]
    pads = [lane_pad(d) for d in dims]

    def pad_mat(a, nrows, ncols, dtype):
        out = jnp.zeros((nrows, ncols), dtype=jnp.float32)
        out = out.at[: a.shape[0], : a.shape[1]].set(a.astype(jnp.float32))
        return out.astype(dtype)

    x_pad = pad_mat(x, n, pads[0], jnp.float32)
    layer_args = []
    for i, (w, b) in enumerate(zip(weights, biases)):
        # K dim of W follows the lane width of the resident activation at layer i.
        layer_args.append(pad_mat(w, pads[i], pads[i + 1], jnp.bfloat16))
        layer_args.append(pad_mat(b.reshape(1, -1), 1, pads[i + 1], jnp.float32))

    scal = jnp.stack([p, q, r, c1, c2, c3]).astype(jnp.float32)
    d1_2d = jnp.broadcast_to(jnp.asarray(d1, jnp.float32).reshape(1, -1), (1, n))
    adj_f = adj.astype(jnp.float32)

    # Advisory cost estimate so XLA schedules around the fused custom call.
    flops = 4 * n * n  # genlap prologue (diag add, rowsum, scales)
    for i in range(num_layers):
        flops += 2 * n * pads[i] * pads[i + 1]      # h @ W
        flops += 2 * n * n * pads[i + 1]            # T @ (dr * support)
        flops += 6 * n * pads[i + 1]                # row scalings / bias / relu
    transcendentals = 6 * n + n * pads[-1]          # safe_pow exp/log + softmax exp/log
    bytes_accessed = int(
        adj_f.size * 4 + x_pad.size * 4 + n * pads[-1] * 4
        + scal.size * 4 + d1_2d.size * 4
        + sum(int(a.size) * a.dtype.itemsize for a in layer_args)
    )

    out_pad = pl.pallas_call(
        functools.partial(fused_gcn_kernel, num_layers=num_layers, out_dim=out_dim),
        out_shape=jax.ShapeDtypeStruct((n, pads[-1]), jnp.float32),
        in_specs=[pl.BlockSpec(memory_space=pltpu.MemorySpace.SMEM)]
        + [pl.BlockSpec(memory_space=pltpu.MemorySpace.VMEM)] * (3 + 2 * num_layers),
        out_specs=pl.BlockSpec(memory_space=pltpu.MemorySpace.VMEM),
        cost_estimate=pl.CostEstimate(
            flops=int(flops),
            transcendentals=int(transcendentals),
            bytes_accessed=bytes_accessed,
        ),
    )(scal, adj_f, d1_2d, x_pad, *layer_args)

    return out_pad[:, :out_dim]


# ----------------------------------------------------------------------------
# Plain-JAX f32 reference for validation (matrix formulation, like PyTorch)
# ----------------------------------------------------------------------------
def gcn_forward_ref(x, adj, weights, biases, genlap_params):
    p, q, r, c1, c2, c3, d1 = genlap_params
    n = adj.shape[0]
    eye = jnp.eye(n, dtype=jnp.float32)
    temp_adj = adj + d1 * eye
    diags = temp_adj.sum(axis=1)
    gso = (c1 * jnp.diag(diags ** p)
           + c2 * (jnp.diag(diags ** q) @ temp_adj @ jnp.diag(diags ** r))
           + c3 * eye)
    h = x
    n_layers = len(weights)
    for i, (w, b) in enumerate(zip(weights, biases)):
        h = gso @ (h @ w) + b
        if i < n_layers - 1:
            h = jnp.maximum(h, 0.0)
    return jax.nn.log_softmax(h, axis=1)


# ----------------------------------------------------------------------------
# Deterministic parameter / input setup
# ----------------------------------------------------------------------------
def xavier_uniform(key, shape):
    fan_in, fan_out = shape
    bound = (6.0 / (fan_in + fan_out)) ** 0.5
    return jax.random.uniform(key, shape, jnp.float32, -bound, bound)


if __name__ == "__main__":
    N = 128           # nodes (lane-dense adjacency)
    input_dim = 32
    hidden_dim = 32
    output_dim = 16
    num_layers = 3

    key = jax.random.PRNGKey(0)
    k_x, k_adj, k_w = jax.random.split(key, 3)

    # node features
    x = jax.random.normal(k_x, (N, input_dim), dtype=jnp.float32)

    # random symmetric 0/1 adjacency, zero diagonal
    a = (jax.random.uniform(k_adj, (N, N)) < 0.1).astype(jnp.float32)
    adj = jnp.triu(a, 1)
    adj = adj + adj.T

    # layer weights/biases: [in->hid, hid->hid, hid->out]
    dims = [input_dim] + [hidden_dim] * (num_layers - 1) + [output_dim]
    weights, biases = [], []
    wkeys = jax.random.split(k_w, num_layers)
    for i in range(num_layers):
        weights.append(xavier_uniform(wkeys[i], (dims[i], dims[i + 1])))
        biases.append(jnp.zeros((dims[i + 1],), dtype=jnp.float32))

    # genlap_init == 'GCN': p=0, q=-1/2, r=-1/2, c1=0, c2=1, c3=0, d1=ones(N)
    genlap_params = (
        jnp.float32(0.0), jnp.float32(-0.5), jnp.float32(-0.5),
        jnp.float32(0.0), jnp.float32(1.0), jnp.float32(0.0),
        jnp.ones((N,), dtype=jnp.float32),
    )

    out = gcn_forward(x, adj, weights, biases, genlap_params)
    out = jax.block_until_ready(out)

    ref = gcn_forward_ref(x, adj, weights, biases, genlap_params)
    assert out.shape == (N, output_dim)
    # log_softmax rows must exponentiate to probability distributions
    row_sums = jnp.sum(jnp.exp(out), axis=1)
    assert jnp.max(jnp.abs(row_sums - 1.0)) < 1e-3, "log_softmax rows not normalized"
    # bf16 MXU operands (f32 accumulate) introduce ~1e-3 abs error vs f32 reference
    assert jnp.max(jnp.abs(out - ref)) < 5e-2, "Pallas output mismatch vs reference"

    print("KERNEL_OK")
</pallas_src>

<mosaic_0001>
module attributes {stable_mosaic.version = 11 : i64} {
  func.func @fused_gcn_kernel(%arg0: memref<6xf32, #tpu.memory_space<smem>>, %arg1: memref<128x128xf32, #tpu.memory_space<vmem>>, %arg2: memref<1x128xf32, #tpu.memory_space<vmem>>, %arg3: memref<128x128xf32, #tpu.memory_space<vmem>>, %arg4: memref<128x128xbf16, #tpu.memory_space<vmem>>, %arg5: memref<1x128xf32, #tpu.memory_space<vmem>>, %arg6: memref<128x128xbf16, #tpu.memory_space<vmem>>, %arg7: memref<1x128xf32, #tpu.memory_space<vmem>>, %arg8: memref<128x128xbf16, #tpu.memory_space<vmem>>, %arg9: memref<1x128xf32, #tpu.memory_space<vmem>>, %arg10: memref<128x128xf32, #tpu.memory_space<vmem>>) attributes {dimension_semantics = [], scalar_prefetch = 0 : i64, scratch_operands = 0 : i64, tpu.core_type = #tpu.core_type<tc>} {
    %c0 = arith.constant 0 : index
    %0 = memref.load %arg0[%c0] : memref<6xf32, #tpu.memory_space<smem>>
    %c1 = arith.constant 1 : index
    %1 = memref.load %arg0[%c1] : memref<6xf32, #tpu.memory_space<smem>>
    %c2 = arith.constant 2 : index
    %2 = memref.load %arg0[%c2] : memref<6xf32, #tpu.memory_space<smem>>
    %c3 = arith.constant 3 : index
    %3 = memref.load %arg0[%c3] : memref<6xf32, #tpu.memory_space<smem>>
    %c4 = arith.constant 4 : index
    %4 = memref.load %arg0[%c4] : memref<6xf32, #tpu.memory_space<smem>>
    %c5 = arith.constant 5 : index
    %5 = memref.load %arg0[%c5] : memref<6xf32, #tpu.memory_space<smem>>
    %6 = tpu.iota {dimensions = array<i32: 0>} : vector<128x128xi32>
    %7 = tpu.iota {dimensions = array<i32: 1>} : vector<128x128xi32>
    %8 = arith.cmpi eq, %6, %7 : vector<128x128xi32>
    %c0_0 = arith.constant 0 : index
    %c0_1 = arith.constant 0 : index
    %9 = vector.load %arg1[%c0_0, %c0_1] : memref<128x128xf32, #tpu.memory_space<vmem>>, vector<128x128xf32>
    %c0_2 = arith.constant 0 : index
    %c0_3 = arith.constant 0 : index
    %10 = vector.load %arg2[%c0_2, %c0_3] : memref<1x128xf32, #tpu.memory_space<vmem>>, vector<1x128xf32>
    %11 = vector.broadcast %10 : vector<1x128xf32> to vector<128x128xf32>
    %12 = arith.addf %9, %11 : vector<128x128xf32>
    %13 = arith.select %8, %12, %9 : vector<128x128xi1>, vector<128x128xf32>
    %14 = arith.truncf %13 : vector<128x128xf32> to vector<128x128xbf16>
    %cst = arith.constant dense<0.000000e+00> : vector<128xf32>
    %15 = vector.multi_reduction <add>, %13, %cst [1] : vector<128x128xf32> to vector<128xf32>
    %16 = vector.shape_cast %15 : vector<128xf32> to vector<128x1xf32>
    %cst_4 = arith.constant 0.000000e+00 : f32
    %17 = vector.broadcast %cst_4 : f32 to vector<128x1xf32>
    %18 = arith.cmpf ogt, %16, %17 : vector<128x1xf32>
    %cst_5 = arith.constant 1.000000e+00 : f32
    %19 = vector.broadcast %cst_5 : f32 to vector<128x1xf32>
    %20 = arith.select %18, %16, %19 : vector<128x1xi1>, vector<128x1xf32>
    %21 = math.log %20 : vector<128x1xf32>
    %22 = vector.broadcast %0 : f32 to vector<128x1xf32>
    %23 = arith.mulf %22, %21 : vector<128x1xf32>
    %24 = math.exp %23 : vector<128x1xf32>
    %cst_6 = arith.constant 0.000000e+00 : f32
    %25 = arith.cmpf oeq, %0, %cst_6 : f32
    %cst_7 = arith.constant 0.000000e+00 : f32
    %26 = arith.cmpf ogt, %0, %cst_7 : f32
    %cst_8 = arith.constant 0.000000e+00 : f32
    %cst_9 = arith.constant 0x7F800000 : f32
    %27 = arith.select %26, %cst_8, %cst_9 : f32
    %cst_10 = arith.constant 1.000000e+00 : f32
    %28 = arith.select %25, %cst_10, %27 : f32
    %cst_11 = arith.constant 0.000000e+00 : f32
    %29 = vector.broadcast %cst_11 : f32 to vector<128x1xf32>
    %30 = arith.cmpf ogt, %16, %29 : vector<128x1xf32>
    %cst_12 = arith.constant 0.000000e+00 : f32
    %31 = vector.broadcast %cst_12 : f32 to vector<128x1xf32>
    %32 = arith.cmpf oeq, %16, %31 : vector<128x1xf32>
    %cst_13 = arith.constant 0x7FC00000 : f32
    %33 = vector.broadcast %28 : f32 to vector<128x1xf32>
    %34 = vector.broadcast %cst_13 : f32 to vector<128x1xf32>
    %35 = arith.select %32, %33, %34 : vector<128x1xi1>, vector<128x1xf32>
    %36 = arith.select %30, %24, %35 : vector<128x1xi1>, vector<128x1xf32>
    %cst_14 = arith.constant 0.000000e+00 : f32
    %37 = vector.broadcast %cst_14 : f32 to vector<128x1xf32>
    %38 = arith.cmpf ogt, %16, %37 : vector<128x1xf32>
    %cst_15 = arith.constant 1.000000e+00 : f32
    %39 = vector.broadcast %cst_15 : f32 to vector<128x1xf32>
    %40 = arith.select %38, %16, %39 : vector<128x1xi1>, vector<128x1xf32>
    %41 = math.log %40 : vector<128x1xf32>
    %42 = vector.broadcast %1 : f32 to vector<128x1xf32>
    %43 = arith.mulf %42, %41 : vector<128x1xf32>
    %44 = math.exp %43 : vector<128x1xf32>
    %cst_16 = arith.constant 0.000000e+00 : f32
    %45 = arith.cmpf oeq, %1, %cst_16 : f32
    %cst_17 = arith.constant 0.000000e+00 : f32
    %46 = arith.cmpf ogt, %1, %cst_17 : f32
    %cst_18 = arith.constant 0.000000e+00 : f32
    %cst_19 = arith.constant 0x7F800000 : f32
    %47 = arith.select %46, %cst_18, %cst_19 : f32
    %cst_20 = arith.constant 1.000000e+00 : f32
    %48 = arith.select %45, %cst_20, %47 : f32
    %cst_21 = arith.constant 0.000000e+00 : f32
    %49 = vector.broadcast %cst_21 : f32 to vector<128x1xf32>
    %50 = arith.cmpf ogt, %16, %49 : vector<128x1xf32>
    %cst_22 = arith.constant 0.000000e+00 : f32
    %51 = vector.broadcast %cst_22 : f32 to vector<128x1xf32>
    %52 = arith.cmpf oeq, %16, %51 : vector<128x1xf32>
    %cst_23 = arith.constant 0x7FC00000 : f32
    %53 = vector.broadcast %48 : f32 to vector<128x1xf32>
    %54 = vector.broadcast %cst_23 : f32 to vector<128x1xf32>
    %55 = arith.select %52, %53, %54 : vector<128x1xi1>, vector<128x1xf32>
    %56 = arith.select %50, %44, %55 : vector<128x1xi1>, vector<128x1xf32>
    %cst_24 = arith.constant 0.000000e+00 : f32
    %57 = vector.broadcast %cst_24 : f32 to vector<128x1xf32>
    %58 = arith.cmpf ogt, %16, %57 : vector<128x1xf32>
    %cst_25 = arith.constant 1.000000e+00 : f32
    %59 = vector.broadcast %cst_25 : f32 to vector<128x1xf32>
    %60 = arith.select %58, %16, %59 : vector<128x1xi1>, vector<128x1xf32>
    %61 = math.log %60 : vector<128x1xf32>
    %62 = vector.broadcast %2 : f32 to vector<128x1xf32>
    %63 = arith.mulf %62, %61 : vector<128x1xf32>
    %64 = math.exp %63 : vector<128x1xf32>
    %cst_26 = arith.constant 0.000000e+00 : f32
    %65 = arith.cmpf oeq, %2, %cst_26 : f32
    %cst_27 = arith.constant 0.000000e+00 : f32
    %66 = arith.cmpf ogt, %2, %cst_27 : f32
    %cst_28 = arith.constant 0.000000e+00 : f32
    %cst_29 = arith.constant 0x7F800000 : f32
    %67 = arith.select %66, %cst_28, %cst_29 : f32
    %cst_30 = arith.constant 1.000000e+00 : f32
    %68 = arith.select %65, %cst_30, %67 : f32
    %cst_31 = arith.constant 0.000000e+00 : f32
    %69 = vector.broadcast %cst_31 : f32 to vector<128x1xf32>
    %70 = arith.cmpf ogt, %16, %69 : vector<128x1xf32>
    %cst_32 = arith.constant 0.000000e+00 : f32
    %71 = vector.broadcast %cst_32 : f32 to vector<128x1xf32>
    %72 = arith.cmpf oeq, %16, %71 : vector<128x1xf32>
    %cst_33 = arith.constant 0x7FC00000 : f32
    %73 = vector.broadcast %68 : f32 to vector<128x1xf32>
    %74 = vector.broadcast %cst_33 : f32 to vector<128x1xf32>
    %75 = arith.select %72, %73, %74 : vector<128x1xi1>, vector<128x1xf32>
    %76 = arith.select %70, %64, %75 : vector<128x1xi1>, vector<128x1xf32>
    %77 = vector.broadcast %4 : f32 to vector<128x1xf32>
    %78 = arith.mulf %77, %56 : vector<128x1xf32>
    %79 = vector.broadcast %3 : f32 to vector<128x1xf32>
    %80 = arith.mulf %79, %36 : vector<128x1xf32>
    %81 = vector.broadcast %5 : f32 to vector<128x1xf32>
    %82 = arith.addf %80, %81 : vector<128x1xf32>
    %c0_34 = arith.constant 0 : index
    %c0_35 = arith.constant 0 : index
    %83 = vector.load %arg3[%c0_34, %c0_35] : memref<128x128xf32, #tpu.memory_space<vmem>>, vector<128x128xf32>
    %c0_36 = arith.constant 0 : index
    %c0_37 = arith.constant 0 : index
    %84 = vector.load %arg4[%c0_36, %c0_37] : memref<128x128xbf16, #tpu.memory_space<vmem>>, vector<128x128xbf16>
    %c0_38 = arith.constant 0 : index
    %c0_39 = arith.constant 0 : index
    %85 = vector.load %arg5[%c0_38, %c0_39] : memref<1x128xf32, #tpu.memory_space<vmem>>, vector<1x128xf32>
    %86 = arith.truncf %83 : vector<128x128xf32> to vector<128x128xbf16>
    %cst_40 = arith.constant dense<0.000000e+00> : vector<128x128xf32>
    %87 = tpu.matmul %86, %84, %cst_40 {dimension_numbers = #tpu.dot_dimension_numbers<[1], [0], [0], [1], [0, 0, 1, 1], [], []>} : vector<128x128xbf16>, vector<128x128xbf16>, vector<128x128xf32> -> vector<128x128xf32>
    %88 = vector.broadcast %76 : vector<128x1xf32> to vector<128x128xf32>
    %89 = arith.mulf %88, %87 : vector<128x128xf32>
    %90 = arith.truncf %89 : vector<128x128xf32> to vector<128x128xbf16>
    %cst_41 = arith.constant dense<0.000000e+00> : vector<128x128xf32>
    %91 = tpu.matmul %14, %90, %cst_41 {dimension_numbers = #tpu.dot_dimension_numbers<[1], [0], [0], [1], [0, 0, 1, 1], [], []>} : vector<128x128xbf16>, vector<128x128xbf16>, vector<128x128xf32> -> vector<128x128xf32>
    %92 = vector.broadcast %78 : vector<128x1xf32> to vector<128x128xf32>
    %93 = arith.mulf %92, %91 : vector<128x128xf32>
    %94 = vector.broadcast %82 : vector<128x1xf32> to vector<128x128xf32>
    %95 = arith.mulf %94, %87 : vector<128x128xf32>
    %96 = arith.addf %93, %95 : vector<128x128xf32>
    %97 = vector.broadcast %85 : vector<1x128xf32> to vector<128x128xf32>
    %98 = arith.addf %96, %97 : vector<128x128xf32>
    %cst_42 = arith.constant 0.000000e+00 : f32
    %99 = vector.broadcast %cst_42 : f32 to vector<128x128xf32>
    %100 = arith.maximumf %98, %99 : vector<128x128xf32>
    %c0_43 = arith.constant 0 : index
    %c0_44 = arith.constant 0 : index
    %101 = vector.load %arg6[%c0_43, %c0_44] : memref<128x128xbf16, #tpu.memory_space<vmem>>, vector<128x128xbf16>
    %c0_45 = arith.constant 0 : index
    %c0_46 = arith.constant 0 : index
    %102 = vector.load %arg7[%c0_45, %c0_46] : memref<1x128xf32, #tpu.memory_space<vmem>>, vector<1x128xf32>
    %103 = arith.truncf %100 : vector<128x128xf32> to vector<128x128xbf16>
    %cst_47 = arith.constant dense<0.000000e+00> : vector<128x128xf32>
    %104 = tpu.matmul %103, %101, %cst_47 {dimension_numbers = #tpu.dot_dimension_numbers<[1], [0], [0], [1], [0, 0, 1, 1], [], []>} : vector<128x128xbf16>, vector<128x128xbf16>, vector<128x128xf32> -> vector<128x128xf32>
    %105 = vector.broadcast %76 : vector<128x1xf32> to vector<128x128xf32>
    %106 = arith.mulf %105, %104 : vector<128x128xf32>
    %107 = arith.truncf %106 : vector<128x128xf32> to vector<128x128xbf16>
    %cst_48 = arith.constant dense<0.000000e+00> : vector<128x128xf32>
    %108 = tpu.matmul %14, %107, %cst_48 {dimension_numbers = #tpu.dot_dimension_numbers<[1], [0], [0], [1], [0, 0, 1, 1], [], []>} : vector<128x128xbf16>, vector<128x128xbf16>, vector<128x128xf32> -> vector<128x128xf32>
    %109 = vector.broadcast %78 : vector<128x1xf32> to vector<128x128xf32>
    %110 = arith.mulf %109, %108 : vector<128x128xf32>
    %111 = vector.broadcast %82 : vector<128x1xf32> to vector<128x128xf32>
    %112 = arith.mulf %111, %104 : vector<128x128xf32>
    %113 = arith.addf %110, %112 : vector<128x128xf32>
    %114 = vector.broadcast %102 : vector<1x128xf32> to vector<128x128xf32>
    %115 = arith.addf %113, %114 : vector<128x128xf32>
    %cst_49 = arith.constant 0.000000e+00 : f32
    %116 = vector.broadcast %cst_49 : f32 to vector<128x128xf32>
    %117 = arith.maximumf %115, %116 : vector<128x128xf32>
    %c0_50 = arith.constant 0 : index
    %c0_51 = arith.constant 0 : index
    %118 = vector.load %arg8[%c0_50, %c0_51] : memref<128x128xbf16, #tpu.memory_space<vmem>>, vector<128x128xbf16>
    %c0_52 = arith.constant 0 : index
    %c0_53 = arith.constant 0 : index
    %119 = vector.load %arg9[%c0_52, %c0_53] : memref<1x128xf32, #tpu.memory_space<vmem>>, vector<1x128xf32>
    %120 = arith.truncf %117 : vector<128x128xf32> to vector<128x128xbf16>
    %cst_54 = arith.constant dense<0.000000e+00> : vector<128x128xf32>
    %121 = tpu.matmul %120, %118, %cst_54 {dimension_numbers = #tpu.dot_dimension_numbers<[1], [0], [0], [1], [0, 0, 1, 1], [], []>} : vector<128x128xbf16>, vector<128x128xbf16>, vector<128x128xf32> -> vector<128x128xf32>
    %122 = vector.broadcast %76 : vector<128x1xf32> to vector<128x128xf32>
    %123 = arith.mulf %122, %121 : vector<128x128xf32>
    %124 = arith.truncf %123 : vector<128x128xf32> to vector<128x128xbf16>
    %cst_55 = arith.constant dense<0.000000e+00> : vector<128x128xf32>
    %125 = tpu.matmul %14, %124, %cst_55 {dimension_numbers = #tpu.dot_dimension_numbers<[1], [0], [0], [1], [0, 0, 1, 1], [], []>} : vector<128x128xbf16>, vector<128x128xbf16>, vector<128x128xf32> -> vector<128x128xf32>
    %126 = vector.broadcast %78 : vector<128x1xf32> to vector<128x128xf32>
    %127 = arith.mulf %126, %125 : vector<128x128xf32>
    %128 = vector.broadcast %82 : vector<128x1xf32> to vector<128x128xf32>
    %129 = arith.mulf %128, %121 : vector<128x128xf32>
    %130 = arith.addf %127, %129 : vector<128x128xf32>
    %131 = vector.broadcast %119 : vector<1x128xf32> to vector<128x128xf32>
    %132 = arith.addf %130, %131 : vector<128x128xf32>
    %133 = tpu.iota {dimensions = array<i32: 1>} : vector<128x128xi32>
    %c16_i32 = arith.constant 16 : i32
    %134 = vector.broadcast %c16_i32 : i32 to vector<128x128xi32>
    %135 = arith.cmpi slt, %133, %134 : vector<128x128xi32>
    %cst_56 = arith.constant 0xFF800000 : f32
    %136 = vector.broadcast %cst_56 : f32 to vector<128x128xf32>
    %137 = arith.select %135, %132, %136 : vector<128x128xi1>, vector<128x128xf32>
    %cst_57 = arith.constant dense<0xFF800000> : vector<128xf32>
    %138 = vector.multi_reduction <maximumf>, %137, %cst_57 [1] : vector<128x128xf32> to vector<128xf32>
    %139 = vector.shape_cast %138 : vector<128xf32> to vector<128x1xf32>
    %140 = vector.broadcast %139 : vector<128x1xf32> to vector<128x128xf32>
    %141 = arith.subf %132, %140 : vector<128x128xf32>
    %142 = math.exp %141 : vector<128x128xf32>
    %cst_58 = arith.constant 0.000000e+00 : f32
    %143 = vector.broadcast %cst_58 : f32 to vector<128x128xf32>
    %144 = arith.select %135, %142, %143 : vector<128x128xi1>, vector<128x128xf32>
    %cst_59 = arith.constant dense<0.000000e+00> : vector<128xf32>
    %145 = vector.multi_reduction <add>, %144, %cst_59 [1] : vector<128x128xf32> to vector<128xf32>
    %146 = vector.shape_cast %145 : vector<128xf32> to vector<128x1xf32>
    %147 = math.log %146 : vector<128x1xf32>
    %148 = vector.broadcast %147 : vector<128x1xf32> to vector<128x128xf32>
    %149 = arith.subf %141, %148 : vector<128x128xf32>
    %c0_60 = arith.constant 0 : index
    %c0_61 = arith.constant 0 : index
    %150 = vector.load %arg10[%c0_60, %c0_61] : memref<128x128xf32, #tpu.memory_space<vmem>>, vector<128x128xf32>
    tpu.vector_store %arg10[%c0_60, %c0_61], %149 {strides = array<i32>} : memref<128x128xf32, #tpu.memory_space<vmem>>, vector<128x128xf32>,
    return
  }
}

</mosaic_0001>

<llo_original>
// kernel: tpu_custom_call.1
$region0: #{tpu_custom_call.1}
  #allocation0 [shape = 'u32[]', space=smem, size = 0x4, offset = 0x4, fixed_abs, tag = 'smem constant byte address 0x4 - core index']
  #allocation1 [shape = 'u32[72,128]{1,0:T(1,128)}', space=vmem, size = 0x9000, scoped, tag = 'internal scratch']
  %s0 = inlined_call_operand.hbm [shape: f32[6], index: 0, kind: input, shape index: {}]
  %s1 = inlined_call_operand.hbm [shape: f32[128,128], index: 1, kind: input, shape index: {}]
  %s2 = inlined_call_operand.vmem [shape: f32[1,128], index: 2, kind: input, shape index: {}]
  %s3 = inlined_call_operand.hbm [shape: f32[128,128], index: 3, kind: input, shape index: {}]
  %s4 = inlined_call_operand.hbm [shape: bf16[128,128], index: 4, kind: input, shape index: {}]
  %s5 = inlined_call_operand.vmem [shape: f32[1,128], index: 5, kind: input, shape index: {}]
  %s6 = inlined_call_operand.hbm [shape: bf16[128,128], index: 6, kind: input, shape index: {}]
  %s7 = inlined_call_operand.vmem [shape: f32[1,128], index: 7, kind: input, shape index: {}]
  %s8 = inlined_call_operand.hbm [shape: bf16[128,128], index: 8, kind: input, shape index: {}]
  %s9 = inlined_call_operand.vmem [shape: f32[1,128], index: 9, kind: input, shape index: {}]
  %s10 = inlined_call_operand.hbm [shape: f32[128,128], index: 10, kind: output, shape index: {}]
  %s11 = sld [smem:[#allocation0]]
  $region74: #{tpu_custom_call.1} parent=0
    _
  %s13 = ssub.s32 1, %s11
  %s14 = scalar_select 0, %s13, %s11
  $region1: #{tpu_custom_call.1} parent=0
    #allocation2 [shape = 'u8[512]{0}', space=smem, size = 0x200, scoped, tag = 'input window, operand 0, single buffered']
    #allocation3 [shape = 's32[1]{0}', space=sflag, size = 0x4, scoped, tag = 'scoped memory for tpu_custom_call.1']
    #allocation4 [shape = 's32[1]{0}', space=sflag, size = 0x4, scoped, tag = 'scoped memory for tpu_custom_call.1']
    #allocation5 [shape = 's32[1]{0}', space=sflag, size = 0x4, scoped, tag = 'scoped memory for tpu_custom_call.1']
    #allocation6 [shape = 'u8[65536]{0}', space=vmem, size = 0x10000, scoped, tag = 'input window, operand 1, single buffered']
    #allocation7 [shape = 'u8[65536]{0}', space=vmem, size = 0x10000, scoped, tag = 'input window, operand 3, single buffered']
    #allocation8 [shape = 's32[1]{0}', space=sflag, size = 0x4, scoped, tag = 'scoped memory for tpu_custom_call.1']
    #allocation9 [shape = 'u8[32768]{0}', space=vmem, size = 0x8000, scoped, tag = 'input window, operand 4, single buffered']
    #allocation10 [shape = 'u8[32768]{0}', space=vmem, size = 0x8000, scoped, tag = 'input window, operand 6, single buffered']
    #allocation11 [shape = 's32[1]{0}', space=sflag, size = 0x4, scoped, tag = 'scoped memory for tpu_custom_call.1']
    #allocation12 [shape = 'u8[32768]{0}', space=vmem, size = 0x8000, scoped, tag = 'input window, operand 8, single buffered']
    #allocation13 [shape = 'u8[65536]{0}', space=vmem, size = 0x10000, scoped, tag = 'output window, operand 0, single buffered']
    %15 = vsyncpa [#allocation5], 0
    %16 = vsyncpa [#allocation3], 0
    %17 = vsyncpa [#allocation8], 0
    %18 = vsyncpa [#allocation11], 0
    %19 = vsyncpa [#allocation4], 0
    // Predicated region
    $region2: #{tpu_custom_call.1} parent=1 // pred_check
      _
    $region3: #{tpu_custom_call.1} parent=1 // pred_check_branch
      %21 = sbr.rel (0) target = $region5
    $region4: #{tpu_custom_call.1} parent=1 // pred_region
      %23 = vsyncadd [#allocation5], 0
      %s25 = sshll.u32 %s0, 4
      %s26 = int_to_ptr.hbm [resolvable:$true] %s25
      %28 = dma.hbm_to_smem %s26, 16, [#allocation2], [#allocation5]
    $region5: #{tpu_custom_call.1} parent=1 // pred_fallthru
      _
    // Predicated region
    $region6: #{tpu_custom_call.1} parent=1 // pred_check
      _
    $region7: #{tpu_custom_call.1} parent=1 // pred_check_branch
      %30 = sbr.rel (0) target = $region9
    $region8: #{tpu_custom_call.1} parent=1 // pred_region
      %32 = vsyncadd [#allocation3], 0
      %s33 = sshll.u32 %s1, 4
      %s34 = int_to_ptr.hbm [resolvable:$true] %s33
      %s35 = sshll.u32 [#allocation6], 4
      %s36 = int_to_ptr.vmem [resolvable:$true] %s35
      %41 = dma.hbm_to_vmem [thread:$0]  %s34, 2048, %s36, [#allocation3], 128, 128, 8
    $region9: #{tpu_custom_call.1} parent=1 // pred_fallthru
      _
    // Predicated region
    $region10: #{tpu_custom_call.1} parent=1 // pred_check
      _
    $region11: #{tpu_custom_call.1} parent=1 // pred_check_branch
      %43 = sbr.rel (0) target = $region13
    $region12: #{tpu_custom_call.1} parent=1 // pred_region
      _
    $region13: #{tpu_custom_call.1} parent=1 // pred_fallthru
      _
    // Predicated region
    $region14: #{tpu_custom_call.1} parent=1 // pred_check
      _
    $region15: #{tpu_custom_call.1} parent=1 // pred_check_branch
      %45 = sbr.rel (0) target = $region17
    $region16: #{tpu_custom_call.1} parent=1 // pred_region
      %47 = vsyncadd [#allocation8], 0
      %s48 = sshll.u32 %s3, 4
      %s49 = int_to_ptr.hbm [resolvable:$true] %s48
      %s50 = sshll.u32 [#allocation7], 4
      %s51 = int_to_ptr.vmem [resolvable:$true] %s50
      %56 = dma.hbm_to_vmem [thread:$0]  %s49, 2048, %s51, [#allocation8], 128, 128, 8
    $region17: #{tpu_custom_call.1} parent=1 // pred_fallthru
      _
    // Predicated region
    $region18: #{tpu_custom_call.1} parent=1 // pred_check
      _
    $region19: #{tpu_custom_call.1} parent=1 // pred_check_branch
      %58 = sbr.rel (0) target = $region21
    $region20: #{tpu_custom_call.1} parent=1 // pred_region
      %60 = vsyncadd [#allocation8], 0
      %s61 = sshll.u32 %s4, 4
      %s62 = int_to_ptr.hbm [resolvable:$true] %s61
      %s63 = sshll.u32 [#allocation9], 4
      %s64 = int_to_ptr.vmem [resolvable:$true] %s63
      %69 = dma.hbm_to_vmem [thread:$0]  %s62, 1024, %s64, [#allocation8], 64, 64, 4
    $region21: #{tpu_custom_call.1} parent=1 // pred_fallthru
      _
    // Predicated region
    $region22: #{tpu_custom_call.1} parent=1 // pred_check
      _
    $region23: #{tpu_custom_call.1} parent=1 // pred_check_branch
      %71 = sbr.rel (0) target = $region25
    $region24: #{tpu_custom_call.1} parent=1 // pred_region
      _
    $region25: #{tpu_custom_call.1} parent=1 // pred_fallthru
      _
    // Predicated region
    $region26: #{tpu_custom_call.1} parent=1 // pred_check
      _
    $region27: #{tpu_custom_call.1} parent=1 // pred_check_branch
      %73 = sbr.rel (0) target = $region29
    $region28: #{tpu_custom_call.1} parent=1 // pred_region
      %75 = vsyncadd [#allocation11], 0
      %s76 = sshll.u32 %s6, 4
      %s77 = int_to_ptr.hbm [resolvable:$true] %s76
      %s78 = sshll.u32 [#allocation10], 4
      %s79 = int_to_ptr.vmem [resolvable:$true] %s78
      %84 = dma.hbm_to_vmem [thread:$0]  %s77, 1024, %s79, [#allocation11], 64, 64, 4
    $region29: #{tpu_custom_call.1} parent=1 // pred_fallthru
      _
    // Predicated region
    $region30: #{tpu_custom_call.1} parent=1 // pred_check
      _
    $region31: #{tpu_custom_call.1} parent=1 // pred_check_branch
      %86 = sbr.rel (0) target = $region33
    $region32: #{tpu_custom_call.1} parent=1 // pred_region
      _
    $region33: #{tpu_custom_call.1} parent=1 // pred_fallthru
      _
    // Predicated region
    $region34: #{tpu_custom_call.1} parent=1 // pred_check
      _
    $region35: #{tpu_custom_call.1} parent=1 // pred_check_branch
      %88 = sbr.rel (0) target = $region37
    $region36: #{tpu_custom_call.1} parent=1 // pred_region
      %90 = vsyncadd [#allocation11], 0
      %s91 = sshll.u32 %s8, 4
      %s92 = int_to_ptr.hbm [resolvable:$true] %s91
      %s93 = sshll.u32 [#allocation12], 4
      %s94 = int_to_ptr.vmem [resolvable:$true] %s93
      %99 = dma.hbm_to_vmem [thread:$0]  %s92, 1024, %s94, [#allocation11], 64, 64, 4
    $region37: #{tpu_custom_call.1} parent=1 // pred_fallthru
      _
    // Predicated region
    $region38: #{tpu_custom_call.1} parent=1 // pred_check
      _
    $region39: #{tpu_custom_call.1} parent=1 // pred_check_branch
      %101 = sbr.rel (0) target = $region41
    $region40: #{tpu_custom_call.1} parent=1 // pred_region
      _
    $region41: #{tpu_custom_call.1} parent=1 // pred_fallthru
      _
    // Predicated region
    $region42: #{tpu_custom_call.1} parent=1 // pred_check
      _
    $region43: #{tpu_custom_call.1} parent=1 // pred_check_branch
      %103 = sbr.rel (0) target = $region45
    $region44: #{tpu_custom_call.1} parent=1 // pred_region
      %105 = dma.done [#allocation5], 16
    $region45: #{tpu_custom_call.1} parent=1 // pred_fallthru
      _
    // Predicated region
    $region46: #{tpu_custom_call.1} parent=1 // pred_check
      _
    $region47: #{tpu_custom_call.1} parent=1 // pred_check_branch
      %107 = sbr.rel (0) target = $region49
    $region48: #{tpu_custom_call.1} parent=1 // pred_region
      %109 = dma.done [#allocation3], 2048
    $region49: #{tpu_custom_call.1} parent=1 // pred_fallthru
      _
    // Predicated region
    $region50: #{tpu_custom_call.1} parent=1 // pred_check
      _
    $region51: #{tpu_custom_call.1} parent=1 // pred_check_branch
      %111 = sbr.rel (0) target = $region53
    $region52: #{tpu_custom_call.1} parent=1 // pred_region
      %113 = dma.done [#allocation8], 2048
    $region53: #{tpu_custom_call.1} parent=1 // pred_fallthru
      _
    // Predicated region
    $region54: #{tpu_custom_call.1} parent=1 // pred_check
      _
    $region55: #{tpu_custom_call.1} parent=1 // pred_check_branch
      %115 = sbr.rel (0) target = $region57
    $region56: #{tpu_custom_call.1} parent=1 // pred_region
      %117 = dma.done [#allocation8], 1024
    $region57: #{tpu_custom_call.1} parent=1 // pred_fallthru
      _
    // Predicated region
    $region58: #{tpu_custom_call.1} parent=1 // pred_check
      _
    $region59: #{tpu_custom_call.1} parent=1 // pred_check_branch
      %119 = sbr.rel (0) target = $region61
    $region60: #{tpu_custom_call.1} parent=1 // pred_region
      %121 = dma.done [#allocation11], 1024
    $region61: #{tpu_custom_call.1} parent=1 // pred_fallthru
      _
    // Predicated region
    $region62: #{tpu_custom_call.1} parent=1 // pred_check
      _
    $region63: #{tpu_custom_call.1} parent=1 // pred_check_branch
      %123 = sbr.rel (0) target = $region65
    $region64: #{tpu_custom_call.1} parent=1 // pred_region
      %125 = dma.done [#allocation11], 1024
    $region65: #{tpu_custom_call.1} parent=1 // pred_fallthru
      _
    %126 = sfence
    %s127 = sld [smem:[#allocation2]]
    %s128 = sld [smem:[#allocation2 + $0x1]]
    %s129 = sld [smem:[#allocation2 + $0x2]]
    %s130 = sld [smem:[#allocation2 + $0x3]]
    %s131 = sld [smem:[#allocation2 + $0x4]]
    %s132 = sld [smem:[#allocation2 + $0x5]]
    %v133 = vlaneseq
    %v134 = vshrl.u32 %v133, 7
    %v135 = vadd.s32 %v134, 8
    %v136 = vadd.s32 %v134, 16
    %v137 = vadd.s32 %v134, 24
    %v138 = vadd.s32 %v134, 32
    %v139 = vadd.s32 %v134, 40
    %v140 = vadd.s32 %v134, 48
    %v141 = vadd.s32 %v134, 56
    %v142 = vadd.s32 %v134, 64
    %v143 = vadd.s32 %v134, 72
    %v144 = vadd.s32 %v134, 80
    %v145 = vadd.s32 %v134, 88
    %v146 = vadd.s32 %v134, 96
    %v147 = vadd.s32 %v134, 104
    %v148 = vadd.s32 %v134, 112
    %v149 = vadd.s32 %v134, 120
    %v150 = vlaneseq
    %v151 = vand.u32 %v150, 127
    %vm152 = vcmp.eq.s32.totalorder %v134, %v151
    %vm153 = vcmp.eq.s32.totalorder %v135, %v151
    %vm154 = vcmp.eq.s32.totalorder %v136, %v151
    %vm155 = vcmp.eq.s32.totalorder %v137, %v151
    %vm156 = vcmp.eq.s32.totalorder %v138, %v151
    %vm157 = vcmp.eq.s32.totalorder %v139, %v151
    %vm158 = vcmp.eq.s32.totalorder %v140, %v151
    %vm159 = vcmp.eq.s32.totalorder %v141, %v151
    %vm160 = vcmp.eq.s32.totalorder %v142, %v151
    %vm161 = vcmp.eq.s32.totalorder %v143, %v151
    %vm162 = vcmp.eq.s32.totalorder %v144, %v151
    %vm163 = vcmp.eq.s32.totalorder %v145, %v151
    %vm164 = vcmp.eq.s32.totalorder %v146, %v151
    %vm165 = vcmp.eq.s32.totalorder %v147, %v151
    %vm166 = vcmp.eq.s32.totalorder %v148, %v151
    %vm167 = vcmp.eq.s32.totalorder %v149, %v151
    %v168 = vld [vmem:[#allocation6] sm:$0xff]
    %v169 = vld [vmem:[#allocation6 + $0x8] sm:$0xff]
    %v170 = vld [vmem:[#allocation6 + $0x10] sm:$0xff]
    %v171 = vld [vmem:[#allocation6 + $0x18] sm:$0xff]
    %v172 = vld [vmem:[#allocation6 + $0x20] sm:$0xff]
    %v173 = vld [vmem:[#allocation6 + $0x28] sm:$0xff]
    %v174 = vld [vmem:[#allocation6 + $0x30] sm:$0xff]
    %v175 = vld [vmem:[#allocation6 + $0x38] sm:$0xff]
    %v176 = vld [vmem:[#allocation6 + $0x40] sm:$0xff]
    %v177 = vld [vmem:[#allocation6 + $0x48] sm:$0xff]
    %v178 = vld [vmem:[#allocation6 + $0x50] sm:$0xff]
    %v179 = vld [vmem:[#allocation6 + $0x58] sm:$0xff]
    %v180 = vld [vmem:[#allocation6 + $0x60] sm:$0xff]
    %v181 = vld [vmem:[#allocation6 + $0x68] sm:$0xff]
    %v182 = vld [vmem:[#allocation6 + $0x70] sm:$0xff]
    %v183 = vld [vmem:[#allocation6 + $0x78] sm:$0xff]
    %v184 = vld [vmem:[%s2] sm:$0x1]
    %v186 = vperm.slane %v184, 0
    %v188 = vadd.f32 %v168, %v186
    %v189 = vadd.f32 %v169, %v186
    %v190 = vadd.f32 %v170, %v186
    %v191 = vadd.f32 %v171, %v186
    %v192 = vadd.f32 %v172, %v186
    %v193 = vadd.f32 %v173, %v186
    %v194 = vadd.f32 %v174, %v186
    %v195 = vadd.f32 %v175, %v186
    %v196 = vadd.f32 %v176, %v186
    %v197 = vadd.f32 %v177, %v186
    %v198 = vadd.f32 %v178, %v186
    %v199 = vadd.f32 %v179, %v186
    %v200 = vadd.f32 %v180, %v186
    %v201 = vadd.f32 %v181, %v186
    %v202 = vadd.f32 %v182, %v186
    %v203 = vadd.f32 %v183, %v186
    %v204 = vsel %vm152, %v188, %v168
    %v205 = vsel %vm153, %v189, %v169
    %v206 = vsel %vm154, %v190, %v170
    %v207 = vsel %vm155, %v191, %v171
    %v208 = vsel %vm156, %v192, %v172
    %v209 = vsel %vm157, %v193, %v173
    %v210 = vsel %vm158, %v194, %v174
    %v211 = vsel %vm159, %v195, %v175
    %v212 = vsel %vm160, %v196, %v176
    %v213 = vsel %vm161, %v197, %v177
    %v214 = vsel %vm162, %v198, %v178
    %v215 = vsel %vm163, %v199, %v179
    %v216 = vsel %vm164, %v200, %v180
    %v217 = vsel %vm165, %v201, %v181
    %v218 = vsel %vm166, %v202, %v182
    %v219 = vsel %vm167, %v203, %v183
    %v220 = vpack.c.bf16 %v205, %v204
    %v221 = vpack.c.bf16 %v207, %v206
    %v222 = vpack.c.bf16 %v209, %v208
    %v223 = vpack.c.bf16 %v211, %v210
    %v224 = vpack.c.bf16 %v213, %v212
    %v225 = vpack.c.bf16 %v215, %v214
    %v226 = vpack.c.bf16 %v217, %v216
    %v227 = vpack.c.bf16 %v219, %v218
    %228 = vadd.xlane.f32.xlu0 %v204
    %v229 = vpop.xlane.xlu0 %228
    %230 = vadd.xlane.f32.xlu0 %v205
    %v231 = vpop.xlane.xlu0 %230
    %232 = vadd.xlane.f32.xlu0 %v206
    %v233 = vpop.xlane.xlu0 %232
    %234 = vadd.xlane.f32.xlu0 %v207
    %v235 = vpop.xlane.xlu0 %234
    %236 = vadd.xlane.f32.xlu0 %v208
    %v237 = vpop.xlane.xlu0 %236
    %238 = vadd.xlane.f32.xlu0 %v209
    %v239 = vpop.xlane.xlu0 %238
    %240 = vadd.xlane.f32.xlu0 %v210
    %v241 = vpop.xlane.xlu0 %240
    %242 = vadd.xlane.f32.xlu0 %v211
    %v243 = vpop.xlane.xlu0 %242
    %244 = vadd.xlane.f32.xlu0 %v212
    %v245 = vpop.xlane.xlu0 %244
    %246 = vadd.xlane.f32.xlu0 %v213
    %v247 = vpop.xlane.xlu0 %246
    %248 = vadd.xlane.f32.xlu0 %v214
    %v249 = vpop.xlane.xlu0 %248
    %250 = vadd.xlane.f32.xlu0 %v215
    %v251 = vpop.xlane.xlu0 %250
    %252 = vadd.xlane.f32.xlu0 %v216
    %v253 = vpop.xlane.xlu0 %252
    %254 = vadd.xlane.f32.xlu0 %v217
    %v255 = vpop.xlane.xlu0 %254
    %256 = vadd.xlane.f32.xlu0 %v218
    %v257 = vpop.xlane.xlu0 %256
    %258 = vadd.xlane.f32.xlu0 %v219
    %v259 = vpop.xlane.xlu0 %258
    %vm260 = vcmp.gt.f32.partialorder %v229, 0.0
    %vm261 = vcmp.gt.f32.partialorder %v231, 0.0
    %vm262 = vcmp.gt.f32.partialorder %v233, 0.0
    %vm263 = vcmp.gt.f32.partialorder %v235, 0.0
    %vm264 = vcmp.gt.f32.partialorder %v237, 0.0
    %vm265 = vcmp.gt.f32.partialorder %v239, 0.0
    %vm266 = vcmp.gt.f32.partialorder %v241, 0.0
    %vm267 = vcmp.gt.f32.partialorder %v243, 0.0
    %vm268 = vcmp.gt.f32.partialorder %v245, 0.0
    %vm269 = vcmp.gt.f32.partialorder %v247, 0.0
    %vm270 = vcmp.gt.f32.partialorder %v249, 0.0
    %vm271 = vcmp.gt.f32.partialorder %v251, 0.0
    %vm272 = vcmp.gt.f32.partialorder %v253, 0.0
    %vm273 = vcmp.gt.f32.partialorder %v255, 0.0
    %vm274 = vcmp.gt.f32.partialorder %v257, 0.0
    %vm275 = vcmp.gt.f32.partialorder %v259, 0.0
    %v276 = vsel %vm260, %v229, 1.0
    %v277 = vsel %vm261, %v231, 1.0
    %v278 = vsel %vm262, %v233, 1.0
    %v279 = vsel %vm263, %v235, 1.0
    %v280 = vsel %vm264, %v237, 1.0
    %v281 = vsel %vm265, %v239, 1.0
    %v282 = vsel %vm266, %v241, 1.0
    %v283 = vsel %vm267, %v243, 1.0
    %v284 = vsel %vm268, %v245, 1.0
    %v285 = vsel %vm269, %v247, 1.0
    %v286 = vsel %vm270, %v249, 1.0
    %v287 = vsel %vm271, %v251, 1.0
    %v288 = vsel %vm272, %v253, 1.0
    %v289 = vsel %vm273, %v255, 1.0
    %v290 = vsel %vm274, %v257, 1.0
    %v291 = vsel %vm275, %v259, 1.0
    %v292 = vlog2.pop %v276
    %v293 = vmul.f32 %v292, 0.6931472
    %v294 = vlog2.pop %v277
    %v295 = vmul.f32 %v294, 0.6931472
    %v296 = vlog2.pop %v278
    %v297 = vmul.f32 %v296, 0.6931472
    %v298 = vlog2.pop %v279
    %v299 = vmul.f32 %v298, 0.6931472
    %v300 = vlog2.pop %v280
    %v301 = vmul.f32 %v300, 0.6931472
    %v302 = vlog2.pop %v281
    %v303 = vmul.f32 %v302, 0.6931472
    %v304 = vlog2.pop %v282
    %v305 = vmul.f32 %v304, 0.6931472
    %v306 = vlog2.pop %v283
    %v307 = vmul.f32 %v306, 0.6931472
    %v308 = vlog2.pop %v284
    %v309 = vmul.f32 %v308, 0.6931472
    %v310 = vlog2.pop %v285
    %v311 = vmul.f32 %v310, 0.6931472
    %v312 = vlog2.pop %v286
    %v313 = vmul.f32 %v312, 0.6931472
    %v314 = vlog2.pop %v287
    %v315 = vmul.f32 %v314, 0.6931472
    %v316 = vlog2.pop %v288
    %v317 = vmul.f32 %v316, 0.6931472
    %v318 = vlog2.pop %v289
    %v319 = vmul.f32 %v318, 0.6931472
    %v320 = vlog2.pop %v290
    %v321 = vmul.f32 %v320, 0.6931472
    %v322 = vlog2.pop %v291
    %v323 = vmul.f32 %v322, 0.6931472
    %v324 = vstv %s127
    %v325 = vmul.f32 %v324, %v293
    %v326 = vmul.f32 %v324, %v295
    %v327 = vmul.f32 %v324, %v297
    %v328 = vmul.f32 %v324, %v299
    %v329 = vmul.f32 %v324, %v301
    %v330 = vmul.f32 %v324, %v303
    %v331 = vmul.f32 %v324, %v305
    %v332 = vmul.f32 %v324, %v307
    %v333 = vmul.f32 %v324, %v309
    %v334 = vmul.f32 %v324, %v311
    %v335 = vmul.f32 %v324, %v313
    %v336 = vmul.f32 %v324, %v315
    %v337 = vmul.f32 %v324, %v317
    %v338 = vmul.f32 %v324, %v319
    %v339 = vmul.f32 %v324, %v321
    %v340 = vmul.f32 %v324, %v323
    %v341 = vmul.f32 %v325, 1.442695
    %v342 = vpow.pop %v341
    %v343 = vmul.f32 %v326, 1.442695
    %v344 = vpow.pop %v343
    %v345 = vmul.f32 %v327, 1.442695
    %v346 = vpow.pop %v345
    %v347 = vmul.f32 %v328, 1.442695
    %v348 = vpow.pop %v347
    %v349 = vmul.f32 %v329, 1.442695
    %v350 = vpow.pop %v349
    %v351 = vmul.f32 %v330, 1.442695
    %v352 = vpow.pop %v351
    %v353 = vmul.f32 %v331, 1.442695
    %v354 = vpow.pop %v353
    %v355 = vmul.f32 %v332, 1.442695
    %v356 = vpow.pop %v355
    %v357 = vmul.f32 %v333, 1.442695
    %v358 = vpow.pop %v357
    %v359 = vmul.f32 %v334, 1.442695
    %v360 = vpow.pop %v359
    %v361 = vmul.f32 %v335, 1.442695
    %v362 = vpow.pop %v361
    %v363 = vmul.f32 %v336, 1.442695
    %v364 = vpow.pop %v363
    %v365 = vmul.f32 %v337, 1.442695
    %v366 = vpow.pop %v365
    %v367 = vmul.f32 %v338, 1.442695
    %v368 = vpow.pop %v367
    %v369 = vmul.f32 %v339, 1.442695
    %v370 = vpow.pop %v369
    %v371 = vmul.f32 %v340, 1.442695
    %v372 = vpow.pop %v371
    %p373 = scmp.eq.f32.partialorder %s127, 0.0
    %p374 = scmp.gt.f32.partialorder %s127, 0.0
    %s375 = scalar_select %p374, 0.0, inf
    %s376 = scalar_select %p373, 1.0, %s375
    %vm377 = vcmp.eq.f32.partialorder %v229, 0.0
    %vm378 = vcmp.eq.f32.partialorder %v231, 0.0
    %vm379 = vcmp.eq.f32.partialorder %v233, 0.0
    %vm380 = vcmp.eq.f32.partialorder %v235, 0.0
    %vm381 = vcmp.eq.f32.partialorder %v237, 0.0
    %vm382 = vcmp.eq.f32.partialorder %v239, 0.0
    %vm383 = vcmp.eq.f32.partialorder %v241, 0.0
    %vm384 = vcmp.eq.f32.partialorder %v243, 0.0
    %vm385 = vcmp.eq.f32.partialorder %v245, 0.0
    %vm386 = vcmp.eq.f32.partialorder %v247, 0.0
    %vm387 = vcmp.eq.f32.partialorder %v249, 0.0
    %vm388 = vcmp.eq.f32.partialorder %v251, 0.0
    %vm389 = vcmp.eq.f32.partialorder %v253, 0.0
    %vm390 = vcmp.eq.f32.partialorder %v255, 0.0
    %vm391 = vcmp.eq.f32.partialorder %v257, 0.0
    %vm392 = vcmp.eq.f32.partialorder %v259, 0.0
    %v393 = vstv %s376
    %v394 = vsel %vm377, %v393, nan
    %v395 = vsel %vm378, %v393, nan
    %v396 = vsel %vm379, %v393, nan
    %v397 = vsel %vm380, %v393, nan
    %v398 = vsel %vm381, %v393, nan
    %v399 = vsel %vm382, %v393, nan
    %v400 = vsel %vm383, %v393, nan
    %v401 = vsel %vm384, %v393, nan
    %v402 = vsel %vm385, %v393, nan
    %v403 = vsel %vm386, %v393, nan
    %v404 = vsel %vm387, %v393, nan
    %v405 = vsel %vm388, %v393, nan
    %v406 = vsel %vm389, %v393, nan
    %v407 = vsel %vm390, %v393, nan
    %v408 = vsel %vm391, %v393, nan
    %v409 = vsel %vm392, %v393, nan
    %v410 = vsel %vm260, %v342, %v394
    %v411 = vsel %vm261, %v344, %v395
    %v412 = vsel %vm262, %v346, %v396
    %v413 = vsel %vm263, %v348, %v397
    %v414 = vsel %vm264, %v350, %v398
    %v415 = vsel %vm265, %v352, %v399
    %v416 = vsel %vm266, %v354, %v400
    %v417 = vsel %vm267, %v356, %v401
    %v418 = vsel %vm268, %v358, %v402
    %v419 = vsel %vm269, %v360, %v403
    %v420 = vsel %vm270, %v362, %v404
    %v421 = vsel %vm271, %v364, %v405
    %v422 = vsel %vm272, %v366, %v406
    %v423 = vsel %vm273, %v368, %v407
    %v424 = vsel %vm274, %v370, %v408
    %v425 = vsel %vm275, %v372, %v409
    %v426 = vstv %s128
    %v427 = vmul.f32 %v426, %v293
    %v428 = vmul.f32 %v426, %v295
    %v429 = vmul.f32 %v426, %v297
    %v430 = vmul.f32 %v426, %v299
    %v431 = vmul.f32 %v426, %v301
    %v432 = vmul.f32 %v426, %v303
    %v433 = vmul.f32 %v426, %v305
    %v434 = vmul.f32 %v426, %v307
    %v435 = vmul.f32 %v426, %v309
    %v436 = vmul.f32 %v426, %v311
    %v437 = vmul.f32 %v426, %v313
    %v438 = vmul.f32 %v426, %v315
    %v439 = vmul.f32 %v426, %v317
    %v440 = vmul.f32 %v426, %v319
    %v441 = vmul.f32 %v426, %v321
    %v442 = vmul.f32 %v426, %v323
    %v443 = vmul.f32 %v427, 1.442695
    %v444 = vpow.pop %v443
    %v445 = vmul.f32 %v428, 1.442695
    %v446 = vpow.pop %v445
    %v447 = vmul.f32 %v429, 1.442695
    %v448 = vpow.pop %v447
    %v449 = vmul.f32 %v430, 1.442695
    %v450 = vpow.pop %v449
    %v451 = vmul.f32 %v431, 1.442695
    %v452 = vpow.pop %v451
    %v453 = vmul.f32 %v432, 1.442695
    %v454 = vpow.pop %v453
    %v455 = vmul.f32 %v433, 1.442695
    %v456 = vpow.pop %v455
    %v457 = vmul.f32 %v434, 1.442695
    %v458 = vpow.pop %v457
    %v459 = vmul.f32 %v435, 1.442695
    %v460 = vpow.pop %v459
    %v461 = vmul.f32 %v436, 1.442695
    %v462 = vpow.pop %v461
    %v463 = vmul.f32 %v437, 1.442695
    %v464 = vpow.pop %v463
    %v465 = vmul.f32 %v438, 1.442695
    %v466 = vpow.pop %v465
    %v467 = vmul.f32 %v439, 1.442695
    %v468 = vpow.pop %v467
    %v469 = vmul.f32 %v440, 1.442695
    %v470 = vpow.pop %v469
    %v471 = vmul.f32 %v441, 1.442695
    %v472 = vpow.pop %v471
    %v473 = vmul.f32 %v442, 1.442695
    %v474 = vpow.pop %v473
    %p475 = scmp.eq.f32.partialorder %s128, 0.0
    %p476 = scmp.gt.f32.partialorder %s128, 0.0
    %s477 = scalar_select %p476, 0.0, inf
    %s478 = scalar_select %p475, 1.0, %s477
    %v479 = vstv %s478
    %v480 = vsel %vm377, %v479, nan
    %v481 = vsel %vm378, %v479, nan
    %v482 = vsel %vm379, %v479, nan
    %v483 = vsel %vm380, %v479, nan
    %v484 = vsel %vm381, %v479, nan
    %v485 = vsel %vm382, %v479, nan
    %v486 = vsel %vm383, %v479, nan
    %v487 = vsel %vm384, %v479, nan
    %v488 = vsel %vm385, %v479, nan
    %v489 = vsel %vm386, %v479, nan
    %v490 = vsel %vm387, %v479, nan
    %v491 = vsel %vm388, %v479, nan
    %v492 = vsel %vm389, %v479, nan
    %v493 = vsel %vm390, %v479, nan
    %v494 = vsel %vm391, %v479, nan
    %v495 = vsel %vm392, %v479, nan
    %v496 = vsel %vm260, %v444, %v480
    %v497 = vsel %vm261, %v446, %v481
    %v498 = vsel %vm262, %v448, %v482
    %v499 = vsel %vm263, %v450, %v483
    %v500 = vsel %vm264, %v452, %v484
    %v501 = vsel %vm265, %v454, %v485
    %v502 = vsel %vm266, %v456, %v486
    %v503 = vsel %vm267, %v458, %v487
    %v504 = vsel %vm268, %v460, %v488
    %v505 = vsel %vm269, %v462, %v489
    %v506 = vsel %vm270, %v464, %v490
    %v507 = vsel %vm271, %v466, %v491
    %v508 = vsel %vm272, %v468, %v492
    %v509 = vsel %vm273, %v470, %v493
    %v510 = vsel %vm274, %v472, %v494
    %v511 = vsel %vm275, %v474, %v495
    %v512 = vstv %s129
    %v513 = vmul.f32 %v512, %v293
    %v514 = vmul.f32 %v512, %v295
    %v515 = vmul.f32 %v512, %v297
    %v516 = vmul.f32 %v512, %v299
    %v517 = vmul.f32 %v512, %v301
    %v518 = vmul.f32 %v512, %v303
    %v519 = vmul.f32 %v512, %v305
    %v520 = vmul.f32 %v512, %v307
    %v521 = vmul.f32 %v512, %v309
    %v522 = vmul.f32 %v512, %v311
    %v523 = vmul.f32 %v512, %v313
    %v524 = vmul.f32 %v512, %v315
    %v525 = vmul.f32 %v512, %v317
    %v526 = vmul.f32 %v512, %v319
    %v527 = vmul.f32 %v512, %v321
    %v528 = vmul.f32 %v512, %v323
    %v529 = vmul.f32 %v513, 1.442695
    %v530 = vpow.pop %v529
    %v531 = vmul.f32 %v514, 1.442695
    %v532 = vpow.pop %v531
    %v533 = vmul.f32 %v515, 1.442695
    %v534 = vpow.pop %v533
    %v535 = vmul.f32 %v516, 1.442695
    %v536 = vpow.pop %v535
    %v537 = vmul.f32 %v517, 1.442695
    %v538 = vpow.pop %v537
    %v539 = vmul.f32 %v518, 1.442695
    %v540 = vpow.pop %v539
    %v541 = vmul.f32 %v519, 1.442695
    %v542 = vpow.pop %v541
    %v543 = vmul.f32 %v520, 1.442695
    %v544 = vpow.pop %v543
    %v545 = vmul.f32 %v521, 1.442695
    %v546 = vpow.pop %v545
    %v547 = vmul.f32 %v522, 1.442695
    %v548 = vpow.pop %v547
    %v549 = vmul.f32 %v523, 1.442695
    %v550 = vpow.pop %v549
    %v551 = vmul.f32 %v524, 1.442695
    %v552 = vpow.pop %v551
    %v553 = vmul.f32 %v525, 1.442695
    %v554 = vpow.pop %v553
    %v555 = vmul.f32 %v526, 1.442695
    %v556 = vpow.pop %v555
    %v557 = vmul.f32 %v527, 1.442695
    %v558 = vpow.pop %v557
    %v559 = vmul.f32 %v528, 1.442695
    %v560 = vpow.pop %v559
    %p561 = scmp.eq.f32.partialorder %s129, 0.0
    %p562 = scmp.gt.f32.partialorder %s129, 0.0
    %s563 = scalar_select %p562, 0.0, inf
    %s564 = scalar_select %p561, 1.0, %s563
    %v565 = vstv %s564
    %v566 = vsel %vm377, %v565, nan
    %v567 = vsel %vm378, %v565, nan
    %v568 = vsel %vm379, %v565, nan
    %v569 = vsel %vm380, %v565, nan
    %v570 = vsel %vm381, %v565, nan
    %v571 = vsel %vm382, %v565, nan
    %v572 = vsel %vm383, %v565, nan
    %v573 = vsel %vm384, %v565, nan
    %v574 = vsel %vm385, %v565, nan
    %v575 = vsel %vm386, %v565, nan
    %v576 = vsel %vm387, %v565, nan
    %v577 = vsel %vm388, %v565, nan
    %v578 = vsel %vm389, %v565, nan
    %v579 = vsel %vm390, %v565, nan
    %v580 = vsel %vm391, %v565, nan
    %v581 = vsel %vm392, %v565, nan
    %v582 = vsel %vm260, %v530, %v566
    %v583 = vsel %vm261, %v532, %v567
    %v584 = vsel %vm262, %v534, %v568
    %v585 = vsel %vm263, %v536, %v569
    %v586 = vsel %vm264, %v538, %v570
    %v587 = vsel %vm265, %v540, %v571
    %v588 = vsel %vm266, %v542, %v572
    %v589 = vsel %vm267, %v544, %v573
    %v590 = vsel %vm268, %v546, %v574
    %v591 = vsel %vm269, %v548, %v575
    %v592 = vsel %vm270, %v550, %v576
    %v593 = vsel %vm271, %v552, %v577
    %v594 = vsel %vm272, %v554, %v578
    %v595 = vsel %vm273, %v556, %v579
    %v596 = vsel %vm274, %v558, %v580
    %v597 = vsel %vm275, %v560, %v581
    %v598 = vstv %s131
    %v599 = vmul.f32 %v598, %v496
    %v600 = vmul.f32 %v598, %v497
    %v601 = vmul.f32 %v598, %v498
    %v602 = vmul.f32 %v598, %v499
    %v603 = vmul.f32 %v598, %v500
    %v604 = vmul.f32 %v598, %v501
    %v605 = vmul.f32 %v598, %v502
    %v606 = vmul.f32 %v598, %v503
    %v607 = vmul.f32 %v598, %v504
    %v608 = vmul.f32 %v598, %v505
    %v609 = vmul.f32 %v598, %v506
    %v610 = vmul.f32 %v598, %v507
    %v611 = vmul.f32 %v598, %v508
    %v612 = vmul.f32 %v598, %v509
    %v613 = vmul.f32 %v598, %v510
    %v614 = vmul.f32 %v598, %v511
    %v615 = vstv %s130
    %v616 = vmul.f32 %v615, %v410
    %v617 = vmul.f32 %v615, %v411
    %v618 = vmul.f32 %v615, %v412
    %v619 = vmul.f32 %v615, %v413
    %v620 = vmul.f32 %v615, %v414
    %v621 = vmul.f32 %v615, %v415
    %v622 = vmul.f32 %v615, %v416
    %v623 = vmul.f32 %v615, %v417
    %v624 = vmul.f32 %v615, %v418
    %v625 = vmul.f32 %v615, %v419
    %v626 = vmul.f32 %v615, %v420
    %v627 = vmul.f32 %v615, %v421
    %v628 = vmul.f32 %v615, %v422
    %v629 = vmul.f32 %v615, %v423
    %v630 = vmul.f32 %v615, %v424
    %v631 = vmul.f32 %v615, %v425
    %v632 = vstv %s132
    %v633 = vadd.f32 %v616, %v632
    %v634 = vadd.f32 %v617, %v632
    %v635 = vadd.f32 %v618, %v632
    %v636 = vadd.f32 %v619, %v632
    %v637 = vadd.f32 %v620, %v632
    %v638 = vadd.f32 %v621, %v632
    %v639 = vadd.f32 %v622, %v632
    %v640 = vadd.f32 %v623, %v632
    %v641 = vadd.f32 %v624, %v632
    %v642 = vadd.f32 %v625, %v632
    %v643 = vadd.f32 %v626, %v632
    %v644 = vadd.f32 %v627, %v632
    %v645 = vadd.f32 %v628, %v632
    %v646 = vadd.f32 %v629, %v632
    %v647 = vadd.f32 %v630, %v632
    %v648 = vadd.f32 %v631, %v632
    %v649 = vld [vmem:[#allocation7] sm:$0xff]
    %v650 = vld [vmem:[#allocation7 + $0x8] sm:$0xff]
    %v651 = vld [vmem:[#allocation7 + $0x10] sm:$0xff]
    %v652 = vld [vmem:[#allocation7 + $0x18] sm:$0xff]
    %v653 = vld [vmem:[#allocation7 + $0x20] sm:$0xff]
    %v654 = vld [vmem:[#allocation7 + $0x28] sm:$0xff]
    %v655 = vld [vmem:[#allocation7 + $0x30] sm:$0xff]
    %v656 = vld [vmem:[#allocation7 + $0x38] sm:$0xff]
    %v657 = vld [vmem:[#allocation7 + $0x40] sm:$0xff]
    %v658 = vld [vmem:[#allocation7 + $0x48] sm:$0xff]
    %v659 = vld [vmem:[#allocation7 + $0x50] sm:$0xff]
    %v660 = vld [vmem:[#allocation7 + $0x58] sm:$0xff]
    %v661 = vld [vmem:[#allocation7 + $0x60] sm:$0xff]
    %v662 = vld [vmem:[#allocation7 + $0x68] sm:$0xff]
    %v663 = vld [vmem:[#allocation7 + $0x70] sm:$0xff]
    %v664 = vld [vmem:[#allocation7 + $0x78] sm:$0xff]
    %v665 = vld [vmem:[#allocation9] sm:$0xf]
    %v666 = vld [vmem:[#allocation9 + $0x4] sm:$0xf]
    %v667 = vld [vmem:[#allocation9 + $0x8] sm:$0xf]
    %v668 = vld [vmem:[#allocation9 + $0xc] sm:$0xf]
    %v669 = vld [vmem:[#allocation9 + $0x10] sm:$0xf]
    %v670 = vld [vmem:[#allocation9 + $0x14] sm:$0xf]
    %v671 = vld [vmem:[#allocation9 + $0x18] sm:$0xf]
    %v672 = vld [vmem:[#allocation9 + $0x1c] sm:$0xf]
    %v673 = vld [vmem:[#allocation9 + $0x20] sm:$0xf]
    %v674 = vld [vmem:[#allocation9 + $0x24] sm:$0xf]
    %v675 = vld [vmem:[#allocation9 + $0x28] sm:$0xf]
    %v676 = vld [vmem:[#allocation9 + $0x2c] sm:$0xf]
    %v677 = vld [vmem:[#allocation9 + $0x30] sm:$0xf]
    %v678 = vld [vmem:[#allocation9 + $0x34] sm:$0xf]
    %v679 = vld [vmem:[#allocation9 + $0x38] sm:$0xf]
    %v680 = vld [vmem:[#allocation9 + $0x3c] sm:$0xf]
    %v681 = vld [vmem:[%s5] sm:$0x1]
    %v682 = vpack.c.bf16 %v650, %v649
    %v683 = vpack.c.bf16 %v652, %v651
    %v684 = vpack.c.bf16 %v654, %v653
    %v685 = vpack.c.bf16 %v656, %v655
    %v686 = vpack.c.bf16 %v658, %v657
    %v687 = vpack.c.bf16 %v660, %v659
    %v688 = vpack.c.bf16 %v662, %v661
    %v689 = vpack.c.bf16 %v664, %v663
    %v706 = vunpack.c.l.b16 %v665
    %v707 = vunpack.c.l.b16 %v666
    %v708 = vunpack.c.l.b16 %v667
    %v709 = vunpack.c.l.b16 %v668
    %v710 = vunpack.c.l.b16 %v669
    %v711 = vunpack.c.l.b16 %v670
    %v712 = vunpack.c.l.b16 %v671
    %v713 = vunpack.c.l.b16 %v672
    %v714 = vunpack.c.l.b16 %v673
    %v715 = vunpack.c.l.b16 %v674
    %v716 = vunpack.c.l.b16 %v675
    %v717 = vunpack.c.l.b16 %v676
    %v718 = vunpack.c.l.b16 %v677
    %v719 = vunpack.c.l.b16 %v678
    %v720 = vunpack.c.l.b16 %v679
    %v721 = vunpack.c.l.b16 %v680
    %v722 = vpack.c.b16 %v707, %v706
    %v723 = vpack.c.b16 %v709, %v708
    %v724 = vpack.c.b16 %v711, %v710
    %v725 = vpack.c.b16 %v713, %v712
    %v726 = vpack.c.b16 %v715, %v714
    %v727 = vpack.c.b16 %v717, %v716
    %v728 = vpack.c.b16 %v719, %v718
    %v729 = vpack.c.b16 %v721, %v720
    %738 = vmatpush.bf16.msra.mxu0 %v729
    %739 = vmatpush.bf16.msra.mxu0 %v728
    %740 = vmatpush.bf16.msra.mxu0 %v727
    %741 = vmatpush.bf16.msra.mxu0 %v726
    %742 = vmatpush.bf16.msra.mxu0 %v725
    %743 = vmatpush.bf16.msra.mxu0 %v724
    %744 = vmatpush.bf16.msra.mxu0 %v723
    %745 = vmatpush.bf16.msra.mxu0 %v722
    %746 = vmatmul.bf16.gmra.mxu0 %v682
    %v747 = vpop.f32.mrf.mxu0
    %v748 = vadd.f32 0.0, %v747
    %v749 = vpop.f32.mrf.mxu0
    %v750 = vadd.f32 0.0, %v749
    %751 = vmatmul.bf16.gmra.mxu0 %v683
    %v752 = vpop.f32.mrf.mxu0
    %v753 = vadd.f32 0.0, %v752
    %v754 = vpop.f32.mrf.mxu0
    %v755 = vadd.f32 0.0, %v754
    %756 = vmatmul.bf16.gmra.mxu0 %v684
    %v757 = vpop.f32.mrf.mxu0
    %v758 = vadd.f32 0.0, %v757
    %v759 = vpop.f32.mrf.mxu0
    %v760 = vadd.f32 0.0, %v759
    %761 = vmatmul.bf16.gmra.mxu0 %v685
    %v762 = vpop.f32.mrf.mxu0
    %v763 = vadd.f32 0.0, %v762
    %v764 = vpop.f32.mrf.mxu0
    %v765 = vadd.f32 0.0, %v764
    %766 = vmatmul.bf16.gmra.mxu0 %v686
    %v767 = vpop.f32.mrf.mxu0
    %v768 = vadd.f32 0.0, %v767
    %v769 = vpop.f32.mrf.mxu0
    %v770 = vadd.f32 0.0, %v769
    %771 = vmatmul.bf16.gmra.mxu0 %v687
    %v772 = vpop.f32.mrf.mxu0
    %v773 = vadd.f32 0.0, %v772
    %v774 = vpop.f32.mrf.mxu0
    %v775 = vadd.f32 0.0, %v774
    %776 = vmatmul.bf16.gmra.mxu0 %v688
    %v777 = vpop.f32.mrf.mxu0
    %v778 = vadd.f32 0.0, %v777
    %v779 = vpop.f32.mrf.mxu0
    %v780 = vadd.f32 0.0, %v779
    %781 = vmatmul.bf16.gmra.mxu0 %v689
    %v782 = vpop.f32.mrf.mxu0
    %v783 = vadd.f32 0.0, %v782
    %v784 = vpop.f32.mrf.mxu0
    %v785 = vadd.f32 0.0, %v784
    %786 = vdwg.mxu0
    %v787 = vmul.f32 %v582, %v748
    %v788 = vmul.f32 %v583, %v750
    %v789 = vmul.f32 %v584, %v753
    %v790 = vmul.f32 %v585, %v755
    %v791 = vmul.f32 %v586, %v758
    %v792 = vmul.f32 %v587, %v760
    %v793 = vmul.f32 %v588, %v763
    %v794 = vmul.f32 %v589, %v765
    %v795 = vmul.f32 %v590, %v768
    %v796 = vmul.f32 %v591, %v770
    %v797 = vmul.f32 %v592, %v773
    %v798 = vmul.f32 %v593, %v775
    %v799 = vmul.f32 %v594, %v778
    %v800 = vmul.f32 %v595, %v780
    %v801 = vmul.f32 %v596, %v783
    %v802 = vmul.f32 %v597, %v785
    %v803 = vpack.c.bf16 %v788, %v787
    %v804 = vpack.c.bf16 %v790, %v789
    %v805 = vpack.c.bf16 %v792, %v791
    %v806 = vpack.c.bf16 %v794, %v793
    %v807 = vpack.c.bf16 %v796, %v795
    %v808 = vpack.c.bf16 %v798, %v797
    %v809 = vpack.c.bf16 %v800, %v799
    %v810 = vpack.c.bf16 %v802, %v801
    %811 = vmatpush.bf16.msra.mxu0 %v810
    %812 = vmatpush.bf16.msra.mxu0 %v809
    %813 = vmatpush.bf16.msra.mxu0 %v808
    %814 = vmatpush.bf16.msra.mxu0 %v807
    %815 = vmatpush.bf16.msra.mxu0 %v806
    %816 = vmatpush.bf16.msra.mxu0 %v805
    %817 = vmatpush.bf16.msra.mxu0 %v804
    %818 = vmatpush.bf16.msra.mxu0 %v803
    %819 = vmatmul.bf16.gmra.mxu0 %v220
    %v820 = vpop.f32.mrf.mxu0
    %v821 = vadd.f32 0.0, %v820
    %v822 = vpop.f32.mrf.mxu0
    %v823 = vadd.f32 0.0, %v822
    %824 = vmatmul.bf16.gmra.mxu0 %v221
    %v825 = vpop.f32.mrf.mxu0
    %v826 = vadd.f32 0.0, %v825
    %v827 = vpop.f32.mrf.mxu0
    %v828 = vadd.f32 0.0, %v827
    %829 = vmatmul.bf16.gmra.mxu0 %v222
    %v830 = vpop.f32.mrf.mxu0
    %v831 = vadd.f32 0.0, %v830
    %v832 = vpop.f32.mrf.mxu0
    %v833 = vadd.f32 0.0, %v832
    %834 = vmatmul.bf16.gmra.mxu0 %v223
    %v835 = vpop.f32.mrf.mxu0
    %v836 = vadd.f32 0.0, %v835
    %v837 = vpop.f32.mrf.mxu0
    %v838 = vadd.f32 0.0, %v837
    %839 = vmatmul.bf16.gmra.mxu0 %v224
    %v840 = vpop.f32.mrf.mxu0
    %v841 = vadd.f32 0.0, %v840
    %v842 = vpop.f32.mrf.mxu0
    %v843 = vadd.f32 0.0, %v842
    %844 = vmatmul.bf16.gmra.mxu0 %v225
    %v845 = vpop.f32.mrf.mxu0
    %v846 = vadd.f32 0.0, %v845
    %v847 = vpop.f32.mrf.mxu0
    %v848 = vadd.f32 0.0, %v847
    %849 = vmatmul.bf16.gmra.mxu0 %v226
    %v850 = vpop.f32.mrf.mxu0
    %v851 = vadd.f32 0.0, %v850
    %v852 = vpop.f32.mrf.mxu0
    %v853 = vadd.f32 0.0, %v852
    %854 = vmatmul.bf16.gmra.mxu0 %v227
    %v855 = vpop.f32.mrf.mxu0
    %v856 = vadd.f32 0.0, %v855
    %v857 = vpop.f32.mrf.mxu0
    %v858 = vadd.f32 0.0, %v857
    %859 = vdwg.mxu0
    %v860 = vmul.f32 %v599, %v821
    %v861 = vmul.f32 %v600, %v823
    %v862 = vmul.f32 %v601, %v826
    %v863 = vmul.f32 %v602, %v828
    %v864 = vmul.f32 %v603, %v831
    %v865 = vmul.f32 %v604, %v833
    %v866 = vmul.f32 %v605, %v836
    %v867 = vmul.f32 %v606, %v838
    %v868 = vmul.f32 %v607, %v841
    %v869 = vmul.f32 %v608, %v843
    %v870 = vmul.f32 %v609, %v846
    %v871 = vmul.f32 %v610, %v848
    %v872 = vmul.f32 %v611, %v851
    %v873 = vmul.f32 %v612, %v853
    %v874 = vmul.f32 %v613, %v856
    %v875 = vmul.f32 %v614, %v858
    %v876 = vmul.f32 %v633, %v748
    %v877 = vmul.f32 %v634, %v750
    %v878 = vmul.f32 %v635, %v753
    %v879 = vmul.f32 %v636, %v755
    %v880 = vmul.f32 %v637, %v758
    %v881 = vmul.f32 %v638, %v760
    %v882 = vmul.f32 %v639, %v763
    %v883 = vmul.f32 %v640, %v765
    %v884 = vmul.f32 %v641, %v768
    %v885 = vmul.f32 %v642, %v770
    %v886 = vmul.f32 %v643, %v773
    %v887 = vmul.f32 %v644, %v775
    %v888 = vmul.f32 %v645, %v778
    %v889 = vmul.f32 %v646, %v780
    %v890 = vmul.f32 %v647, %v783
    %v891 = vmul.f32 %v648, %v785
    %v892 = vadd.f32 %v860, %v876
    %v893 = vadd.f32 %v861, %v877
    %v894 = vadd.f32 %v862, %v878
    %v895 = vadd.f32 %v863, %v879
    %v896 = vadd.f32 %v864, %v880
    %v897 = vadd.f32 %v865, %v881
    %v898 = vadd.f32 %v866, %v882
    %v899 = vadd.f32 %v867, %v883
    %v900 = vadd.f32 %v868, %v884
    %v901 = vadd.f32 %v869, %v885
    %v902 = vadd.f32 %v870, %v886
    %v903 = vadd.f32 %v871, %v887
    %v904 = vadd.f32 %v872, %v888
    %v905 = vadd.f32 %v873, %v889
    %v906 = vadd.f32 %v874, %v890
    %v907 = vadd.f32 %v875, %v891
    %v909 = vperm.slane %v681, 0
    %v911 = vadd.f32 %v892, %v909
    %v912 = vadd.f32 %v893, %v909
    %v913 = vadd.f32 %v894, %v909
    %v914 = vadd.f32 %v895, %v909
    %v915 = vadd.f32 %v896, %v909
    %v916 = vadd.f32 %v897, %v909
    %v917 = vadd.f32 %v898, %v909
    %v918 = vadd.f32 %v899, %v909
    %v919 = vadd.f32 %v900, %v909
    %v920 = vadd.f32 %v901, %v909
    %v921 = vadd.f32 %v902, %v909
    %v922 = vadd.f32 %v903, %v909
    %v923 = vadd.f32 %v904, %v909
    %v924 = vadd.f32 %v905, %v909
    %v925 = vadd.f32 %v906, %v909
    %v926 = vadd.f32 %v907, %v909
    %v927 = vmax.f32 %v911, 0.0
    %v928 = vmax.f32 %v912, 0.0
    %v929 = vmax.f32 %v913, 0.0
    %v930 = vmax.f32 %v914, 0.0
    %v931 = vmax.f32 %v915, 0.0
    %v932 = vmax.f32 %v916, 0.0
    %v933 = vmax.f32 %v917, 0.0
    %v934 = vmax.f32 %v918, 0.0
    %v935 = vmax.f32 %v919, 0.0
    %v936 = vmax.f32 %v920, 0.0
    %v937 = vmax.f32 %v921, 0.0
    %v938 = vmax.f32 %v922, 0.0
    %v939 = vmax.f32 %v923, 0.0
    %v940 = vmax.f32 %v924, 0.0
    %v941 = vmax.f32 %v925, 0.0
    %v942 = vmax.f32 %v926, 0.0
    %v943 = vld [vmem:[#allocation10] sm:$0xf]
    %v944 = vld [vmem:[#allocation10 + $0x4] sm:$0xf]
    %v945 = vld [vmem:[#allocation10 + $0x8] sm:$0xf]
    %v946 = vld [vmem:[#allocation10 + $0xc] sm:$0xf]
    %v947 = vld [vmem:[#allocation10 + $0x10] sm:$0xf]
    %v948 = vld [vmem:[#allocation10 + $0x14] sm:$0xf]
    %v949 = vld [vmem:[#allocation10 + $0x18] sm:$0xf]
    %v950 = vld [vmem:[#allocation10 + $0x1c] sm:$0xf]
    %v951 = vld [vmem:[#allocation10 + $0x20] sm:$0xf]
    %v952 = vld [vmem:[#allocation10 + $0x24] sm:$0xf]
    %v953 = vld [vmem:[#allocation10 + $0x28] sm:$0xf]
    %v954 = vld [vmem:[#allocation10 + $0x2c] sm:$0xf]
    %v955 = vld [vmem:[#allocation10 + $0x30] sm:$0xf]
    %v956 = vld [vmem:[#allocation10 + $0x34] sm:$0xf]
    %v957 = vld [vmem:[#allocation10 + $0x38] sm:$0xf]
    %v958 = vld [vmem:[#allocation10 + $0x3c] sm:$0xf]
    %v959 = vld [vmem:[%s7] sm:$0x1]
    %v960 = vpack.c.bf16 %v928, %v927
    %v961 = vpack.c.bf16 %v930, %v929
    %v962 = vpack.c.bf16 %v932, %v931
    %v963 = vpack.c.bf16 %v934, %v933
    %v964 = vpack.c.bf16 %v936, %v935
    %v965 = vpack.c.bf16 %v938, %v937
    %v966 = vpack.c.bf16 %v940, %v939
    %v967 = vpack.c.bf16 %v942, %v941
    %v984 = vunpack.c.l.b16 %v943
    %v985 = vunpack.c.l.b16 %v944
    %v986 = vunpack.c.l.b16 %v945
    %v987 = vunpack.c.l.b16 %v946
    %v988 = vunpack.c.l.b16 %v947
    %v989 = vunpack.c.l.b16 %v948
    %v990 = vunpack.c.l.b16 %v949
    %v991 = vunpack.c.l.b16 %v950
    %v992 = vunpack.c.l.b16 %v951
    %v993 = vunpack.c.l.b16 %v952
    %v994 = vunpack.c.l.b16 %v953
    %v995 = vunpack.c.l.b16 %v954
    %v996 = vunpack.c.l.b16 %v955
    %v997 = vunpack.c.l.b16 %v956
    %v998 = vunpack.c.l.b16 %v957
    %v999 = vunpack.c.l.b16 %v958
    %v1000 = vpack.c.b16 %v985, %v984
    %v1001 = vpack.c.b16 %v987, %v986
    %v1002 = vpack.c.b16 %v989, %v988
    %v1003 = vpack.c.b16 %v991, %v990
    %v1004 = vpack.c.b16 %v993, %v992
    %v1005 = vpack.c.b16 %v995, %v994
    %v1006 = vpack.c.b16 %v997, %v996
    %v1007 = vpack.c.b16 %v999, %v998
    %1016 = vmatpush.bf16.msra.mxu0 %v1007
    %1017 = vmatpush.bf16.msra.mxu0 %v1006
    %1018 = vmatpush.bf16.msra.mxu0 %v1005
    %1019 = vmatpush.bf16.msra.mxu0 %v1004
    %1020 = vmatpush.bf16.msra.mxu0 %v1003
    %1021 = vmatpush.bf16.msra.mxu0 %v1002
    %1022 = vmatpush.bf16.msra.mxu0 %v1001
    %1023 = vmatpush.bf16.msra.mxu0 %v1000
    %1024 = vmatmul.bf16.gmra.mxu0 %v960
    %v1025 = vpop.f32.mrf.mxu0
    %v1026 = vadd.f32 0.0, %v1025
    %v1027 = vpop.f32.mrf.mxu0
    %v1028 = vadd.f32 0.0, %v1027
    %1029 = vmatmul.bf16.gmra.mxu0 %v961
    %v1030 = vpop.f32.mrf.mxu0
    %v1031 = vadd.f32 0.0, %v1030
    %v1032 = vpop.f32.mrf.mxu0
    %v1033 = vadd.f32 0.0, %v1032
    %1034 = vmatmul.bf16.gmra.mxu0 %v962
    %v1035 = vpop.f32.mrf.mxu0
    %v1036 = vadd.f32 0.0, %v1035
    %v1037 = vpop.f32.mrf.mxu0
    %v1038 = vadd.f32 0.0, %v1037
    %1039 = vmatmul.bf16.gmra.mxu0 %v963
    %v1040 = vpop.f32.mrf.mxu0
    %v1041 = vadd.f32 0.0, %v1040
    %v1042 = vpop.f32.mrf.mxu0
    %v1043 = vadd.f32 0.0, %v1042
    %1044 = vmatmul.bf16.gmra.mxu0 %v964
    %v1045 = vpop.f32.mrf.mxu0
    %v1046 = vadd.f32 0.0, %v1045
    %v1047 = vpop.f32.mrf.mxu0
    %v1048 = vadd.f32 0.0, %v1047
    %1049 = vmatmul.bf16.gmra.mxu0 %v965
    %v1050 = vpop.f32.mrf.mxu0
    %v1051 = vadd.f32 0.0, %v1050
    %v1052 = vpop.f32.mrf.mxu0
    %v1053 = vadd.f32 0.0, %v1052
    %1054 = vmatmul.bf16.gmra.mxu0 %v966
    %v1055 = vpop.f32.mrf.mxu0
    %v1056 = vadd.f32 0.0, %v1055
    %v1057 = vpop.f32.mrf.mxu0
    %v1058 = vadd.f32 0.0, %v1057
    %1059 = vmatmul.bf16.gmra.mxu0 %v967
    %v1060 = vpop.f32.mrf.mxu0
    %v1061 = vadd.f32 0.0, %v1060
    %v1062 = vpop.f32.mrf.mxu0
    %v1063 = vadd.f32 0.0, %v1062
    %1064 = vdwg.mxu0
    %v1065 = vmul.f32 %v582, %v1026
    %v1066 = vmul.f32 %v583, %v1028
    %v1067 = vmul.f32 %v584, %v1031
    %v1068 = vmul.f32 %v585, %v1033
    %v1069 = vmul.f32 %v586, %v1036
    %v1070 = vmul.f32 %v587, %v1038
    %v1071 = vmul.f32 %v588, %v1041
    %v1072 = vmul.f32 %v589, %v1043
    %v1073 = vmul.f32 %v590, %v1046
    %v1074 = vmul.f32 %v591, %v1048
    %v1075 = vmul.f32 %v592, %v1051
    %v1076 = vmul.f32 %v593, %v1053
    %v1077 = vmul.f32 %v594, %v1056
    %v1078 = vmul.f32 %v595, %v1058
    %v1079 = vmul.f32 %v596, %v1061
    %v1080 = vmul.f32 %v597, %v1063
    %v1081 = vpack.c.bf16 %v1066, %v1065
    %v1082 = vpack.c.bf16 %v1068, %v1067
    %v1083 = vpack.c.bf16 %v1070, %v1069
    %v1084 = vpack.c.bf16 %v1072, %v1071
    %v1085 = vpack.c.bf16 %v1074, %v1073
    %v1086 = vpack.c.bf16 %v1076, %v1075
    %v1087 = vpack.c.bf16 %v1078, %v1077
    %v1088 = vpack.c.bf16 %v1080, %v1079
    %1089 = vmatpush.bf16.msra.mxu0 %v1088
    %1090 = vmatpush.bf16.msra.mxu0 %v1087
    %1091 = vmatpush.bf16.msra.mxu0 %v1086
    %1092 = vmatpush.bf16.msra.mxu0 %v1085
    %1093 = vmatpush.bf16.msra.mxu0 %v1084
    %1094 = vmatpush.bf16.msra.mxu0 %v1083
    %1095 = vmatpush.bf16.msra.mxu0 %v1082
    %1096 = vmatpush.bf16.msra.mxu0 %v1081
    %1097 = vmatmul.bf16.gmra.mxu0 %v220
    %v1098 = vpop.f32.mrf.mxu0
    %v1099 = vadd.f32 0.0, %v1098
    %v1100 = vpop.f32.mrf.mxu0
    %v1101 = vadd.f32 0.0, %v1100
    %1102 = vmatmul.bf16.gmra.mxu0 %v221
    %v1103 = vpop.f32.mrf.mxu0
    %v1104 = vadd.f32 0.0, %v1103
    %v1105 = vpop.f32.mrf.mxu0
    %v1106 = vadd.f32 0.0, %v1105
    %1107 = vmatmul.bf16.gmra.mxu0 %v222
    %v1108 = vpop.f32.mrf.mxu0
    %v1109 = vadd.f32 0.0, %v1108
    %v1110 = vpop.f32.mrf.mxu0
    %v1111 = vadd.f32 0.0, %v1110
    %1112 = vmatmul.bf16.gmra.mxu0 %v223
    %v1113 = vpop.f32.mrf.mxu0
    %v1114 = vadd.f32 0.0, %v1113
    %v1115 = vpop.f32.mrf.mxu0
    %v1116 = vadd.f32 0.0, %v1115
    %1117 = vmatmul.bf16.gmra.mxu0 %v224
    %v1118 = vpop.f32.mrf.mxu0
    %v1119 = vadd.f32 0.0, %v1118
    %v1120 = vpop.f32.mrf.mxu0
    %v1121 = vadd.f32 0.0, %v1120
    %1122 = vmatmul.bf16.gmra.mxu0 %v225
    %v1123 = vpop.f32.mrf.mxu0
    %v1124 = vadd.f32 0.0, %v1123
    %v1125 = vpop.f32.mrf.mxu0
    %v1126 = vadd.f32 0.0, %v1125
    %1127 = vmatmul.bf16.gmra.mxu0 %v226
    %v1128 = vpop.f32.mrf.mxu0
    %v1129 = vadd.f32 0.0, %v1128
    %v1130 = vpop.f32.mrf.mxu0
    %v1131 = vadd.f32 0.0, %v1130
    %1132 = vmatmul.bf16.gmra.mxu0 %v227
    %v1133 = vpop.f32.mrf.mxu0
    %v1134 = vadd.f32 0.0, %v1133
    %v1135 = vpop.f32.mrf.mxu0
    %v1136 = vadd.f32 0.0, %v1135
    %1137 = vdwg.mxu0
    %v1138 = vmul.f32 %v599, %v1099
    %v1139 = vmul.f32 %v600, %v1101
    %v1140 = vmul.f32 %v601, %v1104
    %v1141 = vmul.f32 %v602, %v1106
    %v1142 = vmul.f32 %v603, %v1109
    %v1143 = vmul.f32 %v604, %v1111
    %v1144 = vmul.f32 %v605, %v1114
    %v1145 = vmul.f32 %v606, %v1116
    %v1146 = vmul.f32 %v607, %v1119
    %v1147 = vmul.f32 %v608, %v1121
    %v1148 = vmul.f32 %v609, %v1124
    %v1149 = vmul.f32 %v610, %v1126
    %v1150 = vmul.f32 %v611, %v1129
    %v1151 = vmul.f32 %v612, %v1131
    %v1152 = vmul.f32 %v613, %v1134
    %v1153 = vmul.f32 %v614, %v1136
    %v1154 = vmul.f32 %v633, %v1026
    %v1155 = vmul.f32 %v634, %v1028
    %v1156 = vmul.f32 %v635, %v1031
    %v1157 = vmul.f32 %v636, %v1033
    %v1158 = vmul.f32 %v637, %v1036
    %v1159 = vmul.f32 %v638, %v1038
    %v1160 = vmul.f32 %v639, %v1041
    %v1161 = vmul.f32 %v640, %v1043
    %v1162 = vmul.f32 %v641, %v1046
    %v1163 = vmul.f32 %v642, %v1048
    %v1164 = vmul.f32 %v643, %v1051
    %v1165 = vmul.f32 %v644, %v1053
    %v1166 = vmul.f32 %v645, %v1056
    %v1167 = vmul.f32 %v646, %v1058
    %v1168 = vmul.f32 %v647, %v1061
    %v1169 = vmul.f32 %v648, %v1063
    %v1170 = vadd.f32 %v1138, %v1154
    %v1171 = vadd.f32 %v1139, %v1155
    %v1172 = vadd.f32 %v1140, %v1156
    %v1173 = vadd.f32 %v1141, %v1157
    %v1174 = vadd.f32 %v1142, %v1158
    %v1175 = vadd.f32 %v1143, %v1159
    %v1176 = vadd.f32 %v1144, %v1160
    %v1177 = vadd.f32 %v1145, %v1161
    %v1178 = vadd.f32 %v1146, %v1162
    %v1179 = vadd.f32 %v1147, %v1163
    %v1180 = vadd.f32 %v1148, %v1164
    %v1181 = vadd.f32 %v1149, %v1165
    %v1182 = vadd.f32 %v1150, %v1166
    %v1183 = vadd.f32 %v1151, %v1167
    %v1184 = vadd.f32 %v1152, %v1168
    %v1185 = vadd.f32 %v1153, %v1169
    %v1187 = vperm.slane %v959, 0
    %v1189 = vadd.f32 %v1170, %v1187
    %v1190 = vadd.f32 %v1171, %v1187
    %v1191 = vadd.f32 %v1172, %v1187
    %v1192 = vadd.f32 %v1173, %v1187
    %v1193 = vadd.f32 %v1174, %v1187
    %v1194 = vadd.f32 %v1175, %v1187
    %v1195 = vadd.f32 %v1176, %v1187
    %v1196 = vadd.f32 %v1177, %v1187
    %v1197 = vadd.f32 %v1178, %v1187
    %v1198 = vadd.f32 %v1179, %v1187
    %v1199 = vadd.f32 %v1180, %v1187
    %v1200 = vadd.f32 %v1181, %v1187
    %v1201 = vadd.f32 %v1182, %v1187
    %v1202 = vadd.f32 %v1183, %v1187
    %v1203 = vadd.f32 %v1184, %v1187
    %v1204 = vadd.f32 %v1185, %v1187
    %v1205 = vmax.f32 %v1189, 0.0
    %v1206 = vmax.f32 %v1190, 0.0
    %v1207 = vmax.f32 %v1191, 0.0
    %v1208 = vmax.f32 %v1192, 0.0
    %v1209 = vmax.f32 %v1193, 0.0
    %v1210 = vmax.f32 %v1194, 0.0
    %v1211 = vmax.f32 %v1195, 0.0
    %v1212 = vmax.f32 %v1196, 0.0
    %v1213 = vmax.f32 %v1197, 0.0
    %v1214 = vmax.f32 %v1198, 0.0
    %v1215 = vmax.f32 %v1199, 0.0
    %v1216 = vmax.f32 %v1200, 0.0
    %v1217 = vmax.f32 %v1201, 0.0
    %v1218 = vmax.f32 %v1202, 0.0
    %v1219 = vmax.f32 %v1203, 0.0
    %v1220 = vmax.f32 %v1204, 0.0
    %v1221 = vld [vmem:[#allocation12] sm:$0xf]
    %v1222 = vld [vmem:[#allocation12 + $0x4] sm:$0xf]
    %v1223 = vld [vmem:[#allocation12 + $0x8] sm:$0xf]
    %v1224 = vld [vmem:[#allocation12 + $0xc] sm:$0xf]
    %v1225 = vld [vmem:[#allocation12 + $0x10] sm:$0xf]
    %v1226 = vld [vmem:[#allocation12 + $0x14] sm:$0xf]
    %v1227 = vld [vmem:[#allocation12 + $0x18] sm:$0xf]
    %v1228 = vld [vmem:[#allocation12 + $0x1c] sm:$0xf]
    %v1229 = vld [vmem:[#allocation12 + $0x20] sm:$0xf]
    %v1230 = vld [vmem:[#allocation12 + $0x24] sm:$0xf]
    %v1231 = vld [vmem:[#allocation12 + $0x28] sm:$0xf]
    %v1232 = vld [vmem:[#allocation12 + $0x2c] sm:$0xf]
    %v1233 = vld [vmem:[#allocation12 + $0x30] sm:$0xf]
    %v1234 = vld [vmem:[#allocation12 + $0x34] sm:$0xf]
    %v1235 = vld [vmem:[#allocation12 + $0x38] sm:$0xf]
    %v1236 = vld [vmem:[#allocation12 + $0x3c] sm:$0xf]
    %v1237 = vld [vmem:[%s9] sm:$0x1]
    %v1238 = vpack.c.bf16 %v1206, %v1205
    %v1239 = vpack.c.bf16 %v1208, %v1207
    %v1240 = vpack.c.bf16 %v1210, %v1209
    %v1241 = vpack.c.bf16 %v1212, %v1211
    %v1242 = vpack.c.bf16 %v1214, %v1213
    %v1243 = vpack.c.bf16 %v1216, %v1215
    %v1244 = vpack.c.bf16 %v1218, %v1217
    %v1245 = vpack.c.bf16 %v1220, %v1219
    %v1262 = vunpack.c.l.b16 %v1221
    %v1263 = vunpack.c.l.b16 %v1222
    %v1264 = vunpack.c.l.b16 %v1223
    %v1265 = vunpack.c.l.b16 %v1224
    %v1266 = vunpack.c.l.b16 %v1225
    %v1267 = vunpack.c.l.b16 %v1226
    %v1268 = vunpack.c.l.b16 %v1227
    %v1269 = vunpack.c.l.b16 %v1228
    %v1270 = vunpack.c.l.b16 %v1229
    %v1271 = vunpack.c.l.b16 %v1230
    %v1272 = vunpack.c.l.b16 %v1231
    %v1273 = vunpack.c.l.b16 %v1232
    %v1274 = vunpack.c.l.b16 %v1233
    %v1275 = vunpack.c.l.b16 %v1234
    %v1276 = vunpack.c.l.b16 %v1235
    %v1277 = vunpack.c.l.b16 %v1236
    %v1278 = vpack.c.b16 %v1263, %v1262
    %v1279 = vpack.c.b16 %v1265, %v1264
    %v1280 = vpack.c.b16 %v1267, %v1266
    %v1281 = vpack.c.b16 %v1269, %v1268
    %v1282 = vpack.c.b16 %v1271, %v1270
    %v1283 = vpack.c.b16 %v1273, %v1272
    %v1284 = vpack.c.b16 %v1275, %v1274
    %v1285 = vpack.c.b16 %v1277, %v1276
    %1294 = vmatpush.bf16.msra.mxu0 %v1285
    %1295 = vmatpush.bf16.msra.mxu0 %v1284
    %1296 = vmatpush.bf16.msra.mxu0 %v1283
    %1297 = vmatpush.bf16.msra.mxu0 %v1282
    %1298 = vmatpush.bf16.msra.mxu0 %v1281
    %1299 = vmatpush.bf16.msra.mxu0 %v1280
    %1300 = vmatpush.bf16.msra.mxu0 %v1279
    %1301 = vmatpush.bf16.msra.mxu0 %v1278
    %1302 = vmatmul.bf16.gmra.mxu0 %v1238
    %v1303 = vpop.f32.mrf.mxu0
    %v1304 = vadd.f32 0.0, %v1303
    %v1305 = vpop.f32.mrf.mxu0
    %v1306 = vadd.f32 0.0, %v1305
    %1307 = vmatmul.bf16.gmra.mxu0 %v1239
    %v1308 = vpop.f32.mrf.mxu0
    %v1309 = vadd.f32 0.0, %v1308
    %v1310 = vpop.f32.mrf.mxu0
    %v1311 = vadd.f32 0.0, %v1310
    %1312 = vmatmul.bf16.gmra.mxu0 %v1240
    %v1313 = vpop.f32.mrf.mxu0
    %v1314 = vadd.f32 0.0, %v1313
    %v1315 = vpop.f32.mrf.mxu0
    %v1316 = vadd.f32 0.0, %v1315
    %1317 = vmatmul.bf16.gmra.mxu0 %v1241
    %v1318 = vpop.f32.mrf.mxu0
    %v1319 = vadd.f32 0.0, %v1318
    %v1320 = vpop.f32.mrf.mxu0
    %v1321 = vadd.f32 0.0, %v1320
    %1322 = vmatmul.bf16.gmra.mxu0 %v1242
    %v1323 = vpop.f32.mrf.mxu0
    %v1324 = vadd.f32 0.0, %v1323
    %v1325 = vpop.f32.mrf.mxu0
    %v1326 = vadd.f32 0.0, %v1325
    %1327 = vmatmul.bf16.gmra.mxu0 %v1243
    %v1328 = vpop.f32.mrf.mxu0
    %v1329 = vadd.f32 0.0, %v1328
    %v1330 = vpop.f32.mrf.mxu0
    %v1331 = vadd.f32 0.0, %v1330
    %1332 = vmatmul.bf16.gmra.mxu0 %v1244
    %v1333 = vpop.f32.mrf.mxu0
    %v1334 = vadd.f32 0.0, %v1333
    %v1335 = vpop.f32.mrf.mxu0
    %v1336 = vadd.f32 0.0, %v1335
    %1337 = vmatmul.bf16.gmra.mxu0 %v1245
    %v1338 = vpop.f32.mrf.mxu0
    %v1339 = vadd.f32 0.0, %v1338
    %v1340 = vpop.f32.mrf.mxu0
    %v1341 = vadd.f32 0.0, %v1340
    %1342 = vdwg.mxu0
    %v1343 = vmul.f32 %v582, %v1304
    %v1344 = vmul.f32 %v583, %v1306
    %v1345 = vmul.f32 %v584, %v1309
    %v1346 = vmul.f32 %v585, %v1311
    %v1347 = vmul.f32 %v586, %v1314
    %v1348 = vmul.f32 %v587, %v1316
    %v1349 = vmul.f32 %v588, %v1319
    %v1350 = vmul.f32 %v589, %v1321
    %v1351 = vmul.f32 %v590, %v1324
    %v1352 = vmul.f32 %v591, %v1326
    %v1353 = vmul.f32 %v592, %v1329
    %v1354 = vmul.f32 %v593, %v1331
    %v1355 = vmul.f32 %v594, %v1334
    %v1356 = vmul.f32 %v595, %v1336
    %v1357 = vmul.f32 %v596, %v1339
    %v1358 = vmul.f32 %v597, %v1341
    %v1359 = vpack.c.bf16 %v1344, %v1343
    %v1360 = vpack.c.bf16 %v1346, %v1345
    %v1361 = vpack.c.bf16 %v1348, %v1347
    %v1362 = vpack.c.bf16 %v1350, %v1349
    %v1363 = vpack.c.bf16 %v1352, %v1351
    %v1364 = vpack.c.bf16 %v1354, %v1353
    %v1365 = vpack.c.bf16 %v1356, %v1355
    %v1366 = vpack.c.bf16 %v1358, %v1357
    %1367 = vmatpush.bf16.msra.mxu0 %v1366
    %1368 = vmatpush.bf16.msra.mxu0 %v1365
    %1369 = vmatpush.bf16.msra.mxu0 %v1364
    %1370 = vmatpush.bf16.msra.mxu0 %v1363
    %1371 = vmatpush.bf16.msra.mxu0 %v1362
    %1372 = vmatpush.bf16.msra.mxu0 %v1361
    %1373 = vmatpush.bf16.msra.mxu0 %v1360
    %1374 = vmatpush.bf16.msra.mxu0 %v1359
    %1375 = vmatmul.bf16.gmra.mxu0 %v220
    %v1376 = vpop.f32.mrf.mxu0
    %v1377 = vadd.f32 0.0, %v1376
    %v1378 = vpop.f32.mrf.mxu0
    %v1379 = vadd.f32 0.0, %v1378
    %1380 = vmatmul.bf16.gmra.mxu0 %v221
    %v1381 = vpop.f32.mrf.mxu0
    %v1382 = vadd.f32 0.0, %v1381
    %v1383 = vpop.f32.mrf.mxu0
    %v1384 = vadd.f32 0.0, %v1383
    %1385 = vmatmul.bf16.gmra.mxu0 %v222
    %v1386 = vpop.f32.mrf.mxu0
    %v1387 = vadd.f32 0.0, %v1386
    %v1388 = vpop.f32.mrf.mxu0
    %v1389 = vadd.f32 0.0, %v1388
    %1390 = vmatmul.bf16.gmra.mxu0 %v223
    %v1391 = vpop.f32.mrf.mxu0
    %v1392 = vadd.f32 0.0, %v1391
    %v1393 = vpop.f32.mrf.mxu0
    %v1394 = vadd.f32 0.0, %v1393
    %1395 = vmatmul.bf16.gmra.mxu0 %v224
    %v1396 = vpop.f32.mrf.mxu0
    %v1397 = vadd.f32 0.0, %v1396
    %v1398 = vpop.f32.mrf.mxu0
    %v1399 = vadd.f32 0.0, %v1398
    %1400 = vmatmul.bf16.gmra.mxu0 %v225
    %v1401 = vpop.f32.mrf.mxu0
    %v1402 = vadd.f32 0.0, %v1401
    %v1403 = vpop.f32.mrf.mxu0
    %v1404 = vadd.f32 0.0, %v1403
    %1405 = vmatmul.bf16.gmra.mxu0 %v226
    %v1406 = vpop.f32.mrf.mxu0
    %v1407 = vadd.f32 0.0, %v1406
    %v1408 = vpop.f32.mrf.mxu0
    %v1409 = vadd.f32 0.0, %v1408
    %1410 = vmatmul.bf16.gmra.mxu0 %v227
    %v1411 = vpop.f32.mrf.mxu0
    %v1412 = vadd.f32 0.0, %v1411
    %v1413 = vpop.f32.mrf.mxu0
    %v1414 = vadd.f32 0.0, %v1413
    %1415 = vdwg.mxu0
    %v1416 = vmul.f32 %v599, %v1377
    %v1417 = vmul.f32 %v600, %v1379
    %v1418 = vmul.f32 %v601, %v1382
    %v1419 = vmul.f32 %v602, %v1384
    %v1420 = vmul.f32 %v603, %v1387
    %v1421 = vmul.f32 %v604, %v1389
    %v1422 = vmul.f32 %v605, %v1392
    %v1423 = vmul.f32 %v606, %v1394
    %v1424 = vmul.f32 %v607, %v1397
    %v1425 = vmul.f32 %v608, %v1399
    %v1426 = vmul.f32 %v609, %v1402
    %v1427 = vmul.f32 %v610, %v1404
    %v1428 = vmul.f32 %v611, %v1407
    %v1429 = vmul.f32 %v612, %v1409
    %v1430 = vmul.f32 %v613, %v1412
    %v1431 = vmul.f32 %v614, %v1414
    %v1432 = vmul.f32 %v633, %v1304
    %v1433 = vmul.f32 %v634, %v1306
    %v1434 = vmul.f32 %v635, %v1309
    %v1435 = vmul.f32 %v636, %v1311
    %v1436 = vmul.f32 %v637, %v1314
    %v1437 = vmul.f32 %v638, %v1316
    %v1438 = vmul.f32 %v639, %v1319
    %v1439 = vmul.f32 %v640, %v1321
    %v1440 = vmul.f32 %v641, %v1324
    %v1441 = vmul.f32 %v642, %v1326
    %v1442 = vmul.f32 %v643, %v1329
    %v1443 = vmul.f32 %v644, %v1331
    %v1444 = vmul.f32 %v645, %v1334
    %v1445 = vmul.f32 %v646, %v1336
    %v1446 = vmul.f32 %v647, %v1339
    %v1447 = vmul.f32 %v648, %v1341
    %v1448 = vadd.f32 %v1416, %v1432
    %v1449 = vadd.f32 %v1417, %v1433
    %v1450 = vadd.f32 %v1418, %v1434
    %v1451 = vadd.f32 %v1419, %v1435
    %v1452 = vadd.f32 %v1420, %v1436
    %v1453 = vadd.f32 %v1421, %v1437
    %v1454 = vadd.f32 %v1422, %v1438
    %v1455 = vadd.f32 %v1423, %v1439
    %v1456 = vadd.f32 %v1424, %v1440
    %v1457 = vadd.f32 %v1425, %v1441
    %v1458 = vadd.f32 %v1426, %v1442
    %v1459 = vadd.f32 %v1427, %v1443
    %v1460 = vadd.f32 %v1428, %v1444
    %v1461 = vadd.f32 %v1429, %v1445
    %v1462 = vadd.f32 %v1430, %v1446
    %v1463 = vadd.f32 %v1431, %v1447
    %v1465 = vperm.slane %v1237, 0
    %v1467 = vadd.f32 %v1448, %v1465
    %v1468 = vadd.f32 %v1449, %v1465
    %v1469 = vadd.f32 %v1450, %v1465
    %v1470 = vadd.f32 %v1451, %v1465
    %v1471 = vadd.f32 %v1452, %v1465
    %v1472 = vadd.f32 %v1453, %v1465
    %v1473 = vadd.f32 %v1454, %v1465
    %v1474 = vadd.f32 %v1455, %v1465
    %v1475 = vadd.f32 %v1456, %v1465
    %v1476 = vadd.f32 %v1457, %v1465
    %v1477 = vadd.f32 %v1458, %v1465
    %v1478 = vadd.f32 %v1459, %v1465
    %v1479 = vadd.f32 %v1460, %v1465
    %v1480 = vadd.f32 %v1461, %v1465
    %v1481 = vadd.f32 %v1462, %v1465
    %v1482 = vadd.f32 %v1463, %v1465
    %vm1483 = vcmp.lt.s32.totalorder %v151, 16
    %v1484 = vsel %vm1483, %v1467, -inf
    %v1485 = vsel %vm1483, %v1468, -inf
    %v1486 = vsel %vm1483, %v1469, -inf
    %v1487 = vsel %vm1483, %v1470, -inf
    %v1488 = vsel %vm1483, %v1471, -inf
    %v1489 = vsel %vm1483, %v1472, -inf
    %v1490 = vsel %vm1483, %v1473, -inf
    %v1491 = vsel %vm1483, %v1474, -inf
    %v1492 = vsel %vm1483, %v1475, -inf
    %v1493 = vsel %vm1483, %v1476, -inf
    %v1494 = vsel %vm1483, %v1477, -inf
    %v1495 = vsel %vm1483, %v1478, -inf
    %v1496 = vsel %vm1483, %v1479, -inf
    %v1497 = vsel %vm1483, %v1480, -inf
    %v1498 = vsel %vm1483, %v1481, -inf
    %v1499 = vsel %vm1483, %v1482, -inf
    %1500 = vmax.xlane.f32.xlu0 %v1484
    %v1501 = vpop.xlane.xlu0 %1500
    %1502 = vmax.xlane.f32.xlu0 %v1485
    %v1503 = vpop.xlane.xlu0 %1502
    %1504 = vmax.xlane.f32.xlu0 %v1486
    %v1505 = vpop.xlane.xlu0 %1504
    %1506 = vmax.xlane.f32.xlu0 %v1487
    %v1507 = vpop.xlane.xlu0 %1506
    %1508 = vmax.xlane.f32.xlu0 %v1488
    %v1509 = vpop.xlane.xlu0 %1508
    %1510 = vmax.xlane.f32.xlu0 %v1489
    %v1511 = vpop.xlane.xlu0 %1510
    %1512 = vmax.xlane.f32.xlu0 %v1490
    %v1513 = vpop.xlane.xlu0 %1512
    %1514 = vmax.xlane.f32.xlu0 %v1491
    %v1515 = vpop.xlane.xlu0 %1514
    %1516 = vmax.xlane.f32.xlu0 %v1492
    %v1517 = vpop.xlane.xlu0 %1516
    %1518 = vmax.xlane.f32.xlu0 %v1493
    %v1519 = vpop.xlane.xlu0 %1518
    %1520 = vmax.xlane.f32.xlu0 %v1494
    %v1521 = vpop.xlane.xlu0 %1520
    %1522 = vmax.xlane.f32.xlu0 %v1495
    %v1523 = vpop.xlane.xlu0 %1522
    %1524 = vmax.xlane.f32.xlu0 %v1496
    %v1525 = vpop.xlane.xlu0 %1524
    %1526 = vmax.xlane.f32.xlu0 %v1497
    %v1527 = vpop.xlane.xlu0 %1526
    %1528 = vmax.xlane.f32.xlu0 %v1498
    %v1529 = vpop.xlane.xlu0 %1528
    %1530 = vmax.xlane.f32.xlu0 %v1499
    %v1531 = vpop.xlane.xlu0 %1530
    %v1532 = vsub.f32 %v1467, %v1501
    %v1533 = vsub.f32 %v1468, %v1503
    %v1534 = vsub.f32 %v1469, %v1505
    %v1535 = vsub.f32 %v1470, %v1507
    %v1536 = vsub.f32 %v1471, %v1509
    %v1537 = vsub.f32 %v1472, %v1511
    %v1538 = vsub.f32 %v1473, %v1513
    %v1539 = vsub.f32 %v1474, %v1515
    %v1540 = vsub.f32 %v1475, %v1517
    %v1541 = vsub.f32 %v1476, %v1519
    %v1542 = vsub.f32 %v1477, %v1521
    %v1543 = vsub.f32 %v1478, %v1523
    %v1544 = vsub.f32 %v1479, %v1525
    %v1545 = vsub.f32 %v1480, %v1527
    %v1546 = vsub.f32 %v1481, %v1529
    %v1547 = vsub.f32 %v1482, %v1531
    %v1548 = vmul.f32 %v1532, 1.442695
    %v1549 = vpow.pop %v1548
    %v1550 = vmul.f32 %v1533, 1.442695
    %v1551 = vpow.pop %v1550
    %v1552 = vmul.f32 %v1534, 1.442695
    %v1553 = vpow.pop %v1552
    %v1554 = vmul.f32 %v1535, 1.442695
    %v1555 = vpow.pop %v1554
    %v1556 = vmul.f32 %v1536, 1.442695
    %v1557 = vpow.pop %v1556
    %v1558 = vmul.f32 %v1537, 1.442695
    %v1559 = vpow.pop %v1558
    %v1560 = vmul.f32 %v1538, 1.442695
    %v1561 = vpow.pop %v1560
    %v1562 = vmul.f32 %v1539, 1.442695
    %v1563 = vpow.pop %v1562
    %v1564 = vmul.f32 %v1540, 1.442695
    %v1565 = vpow.pop %v1564
    %v1566 = vmul.f32 %v1541, 1.442695
    %v1567 = vpow.pop %v1566
    %v1568 = vmul.f32 %v1542, 1.442695
    %v1569 = vpow.pop %v1568
    %v1570 = vmul.f32 %v1543, 1.442695
    %v1571 = vpow.pop %v1570
    %v1572 = vmul.f32 %v1544, 1.442695
    %v1573 = vpow.pop %v1572
    %v1574 = vmul.f32 %v1545, 1.442695
    %v1575 = vpow.pop %v1574
    %v1576 = vmul.f32 %v1546, 1.442695
    %v1577 = vpow.pop %v1576
    %v1578 = vmul.f32 %v1547, 1.442695
    %v1579 = vpow.pop %v1578
    %v1580 = vsel %vm1483, %v1549, 0.0
    %v1581 = vsel %vm1483, %v1551, 0.0
    %v1582 = vsel %vm1483, %v1553, 0.0
    %v1583 = vsel %vm1483, %v1555, 0.0
    %v1584 = vsel %vm1483, %v1557, 0.0
    %v1585 = vsel %vm1483, %v1559, 0.0
    %v1586 = vsel %vm1483, %v1561, 0.0
    %v1587 = vsel %vm1483, %v1563, 0.0
    %v1588 = vsel %vm1483, %v1565, 0.0
    %v1589 = vsel %vm1483, %v1567, 0.0
    %v1590 = vsel %vm1483, %v1569, 0.0
    %v1591 = vsel %vm1483, %v1571, 0.0
    %v1592 = vsel %vm1483, %v1573, 0.0
    %v1593 = vsel %vm1483, %v1575, 0.0
    %v1594 = vsel %vm1483, %v1577, 0.0
    %v1595 = vsel %vm1483, %v1579, 0.0
    %1596 = vadd.xlane.f32.xlu0 %v1580
    %v1597 = vpop.xlane.xlu0 %1596
    %1598 = vadd.xlane.f32.xlu0 %v1581
    %v1599 = vpop.xlane.xlu0 %1598
    %1600 = vadd.xlane.f32.xlu0 %v1582
    %v1601 = vpop.xlane.xlu0 %1600
    %1602 = vadd.xlane.f32.xlu0 %v1583
    %v1603 = vpop.xlane.xlu0 %1602
    %1604 = vadd.xlane.f32.xlu0 %v1584
    %v1605 = vpop.xlane.xlu0 %1604
    %1606 = vadd.xlane.f32.xlu0 %v1585
    %v1607 = vpop.xlane.xlu0 %1606
    %1608 = vadd.xlane.f32.xlu0 %v1586
    %v1609 = vpop.xlane.xlu0 %1608
    %1610 = vadd.xlane.f32.xlu0 %v1587
    %v1611 = vpop.xlane.xlu0 %1610
    %1612 = vadd.xlane.f32.xlu0 %v1588
    %v1613 = vpop.xlane.xlu0 %1612
    %1614 = vadd.xlane.f32.xlu0 %v1589
    %v1615 = vpop.xlane.xlu0 %1614
    %1616 = vadd.xlane.f32.xlu0 %v1590
    %v1617 = vpop.xlane.xlu0 %1616
    %1618 = vadd.xlane.f32.xlu0 %v1591
    %v1619 = vpop.xlane.xlu0 %1618
    %1620 = vadd.xlane.f32.xlu0 %v1592
    %v1621 = vpop.xlane.xlu0 %1620
    %1622 = vadd.xlane.f32.xlu0 %v1593
    %v1623 = vpop.xlane.xlu0 %1622
    %1624 = vadd.xlane.f32.xlu0 %v1594
    %v1625 = vpop.xlane.xlu0 %1624
    %1626 = vadd.xlane.f32.xlu0 %v1595
    %v1627 = vpop.xlane.xlu0 %1626
    %v1628 = vlog2.pop %v1597
    %v1629 = vmul.f32 %v1628, 0.6931472
    %v1630 = vlog2.pop %v1599
    %v1631 = vmul.f32 %v1630, 0.6931472
    %v1632 = vlog2.pop %v1601
    %v1633 = vmul.f32 %v1632, 0.6931472
    %v1634 = vlog2.pop %v1603
    %v1635 = vmul.f32 %v1634, 0.6931472
    %v1636 = vlog2.pop %v1605
    %v1637 = vmul.f32 %v1636, 0.6931472
    %v1638 = vlog2.pop %v1607
    %v1639 = vmul.f32 %v1638, 0.6931472
    %v1640 = vlog2.pop %v1609
    %v1641 = vmul.f32 %v1640, 0.6931472
    %v1642 = vlog2.pop %v1611
    %v1643 = vmul.f32 %v1642, 0.6931472
    %v1644 = vlog2.pop %v1613
    %v1645 = vmul.f32 %v1644, 0.6931472
    %v1646 = vlog2.pop %v1615
    %v1647 = vmul.f32 %v1646, 0.6931472
    %v1648 = vlog2.pop %v1617
    %v1649 = vmul.f32 %v1648, 0.6931472
    %v1650 = vlog2.pop %v1619
    %v1651 = vmul.f32 %v1650, 0.6931472
    %v1652 = vlog2.pop %v1621
    %v1653 = vmul.f32 %v1652, 0.6931472
    %v1654 = vlog2.pop %v1623
    %v1655 = vmul.f32 %v1654, 0.6931472
    %v1656 = vlog2.pop %v1625
    %v1657 = vmul.f32 %v1656, 0.6931472
    %v1658 = vlog2.pop %v1627
    %v1659 = vmul.f32 %v1658, 0.6931472
    %v1660 = vsub.f32 %v1532, %v1629
    %v1661 = vsub.f32 %v1533, %v1631
    %v1662 = vsub.f32 %v1534, %v1633
    %v1663 = vsub.f32 %v1535, %v1635
    %v1664 = vsub.f32 %v1536, %v1637
    %v1665 = vsub.f32 %v1537, %v1639
    %v1666 = vsub.f32 %v1538, %v1641
    %v1667 = vsub.f32 %v1539, %v1643
    %v1668 = vsub.f32 %v1540, %v1645
    %v1669 = vsub.f32 %v1541, %v1647
    %v1670 = vsub.f32 %v1542, %v1649
    %v1671 = vsub.f32 %v1543, %v1651
    %v1672 = vsub.f32 %v1544, %v1653
    %v1673 = vsub.f32 %v1545, %v1655
    %v1674 = vsub.f32 %v1546, %v1657
    %v1675 = vsub.f32 %v1547, %v1659
    %1676 = vst [vmem:[#allocation13] sm:$0xff] %v1660
    %1677 = vst [vmem:[#allocation13 + $0x8] sm:$0xff] %v1661
    %1678 = vst [vmem:[#allocation13 + $0x10] sm:$0xff] %v1662
    %1679 = vst [vmem:[#allocation13 + $0x18] sm:$0xff] %v1663
    %1680 = vst [vmem:[#allocation13 + $0x20] sm:$0xff] %v1664
    %1681 = vst [vmem:[#allocation13 + $0x28] sm:$0xff] %v1665
    %1682 = vst [vmem:[#allocation13 + $0x30] sm:$0xff] %v1666
    %1683 = vst [vmem:[#allocation13 + $0x38] sm:$0xff] %v1667
    %1684 = vst [vmem:[#allocation13 + $0x40] sm:$0xff] %v1668
    %1685 = vst [vmem:[#allocation13 + $0x48] sm:$0xff] %v1669
    %1686 = vst [vmem:[#allocation13 + $0x50] sm:$0xff] %v1670
    %1687 = vst [vmem:[#allocation13 + $0x58] sm:$0xff] %v1671
    %1688 = vst [vmem:[#allocation13 + $0x60] sm:$0xff] %v1672
    %1689 = vst [vmem:[#allocation13 + $0x68] sm:$0xff] %v1673
    %1690 = vst [vmem:[#allocation13 + $0x70] sm:$0xff] %v1674
    %1691 = vst [vmem:[#allocation13 + $0x78] sm:$0xff] %v1675
    // Predicated region
    $region66: #{tpu_custom_call.1} parent=1 // pred_check
      _
    $region67: #{tpu_custom_call.1} parent=1 // pred_check_branch
      %1693 = sbr.rel (0) target = $region69
    $region68: #{tpu_custom_call.1} parent=1 // pred_region
      %1695 = vsyncadd [#allocation4], 0
      %s1696 = sshll.u32 [#allocation13], 4
      %s1697 = int_to_ptr.vmem [resolvable:$true] %s1696
      %s1698 = sshll.u32 %s10, 4
      %s1699 = int_to_ptr.hbm [resolvable:$true] %s1698
      %1704 = dma.vmem_to_hbm [thread:$0]  %s1697, 2048, %s1699, [#allocation4], 128, 128, 8
    $region69: #{tpu_custom_call.1} parent=1 // pred_fallthru
      _
    // Predicated region
    $region70: #{tpu_custom_call.1} parent=1 // pred_check
      _
    $region71: #{tpu_custom_call.1} parent=1 // pred_check_branch
      %1706 = sbr.rel (0) target = $region73
    $region72: #{tpu_custom_call.1} parent=1 // pred_region
      %1708 = dma.done [#allocation4], 2048
    $region73: #{tpu_custom_call.1} parent=1 // pred_fallthru
      _
    %1709 = vsyncpa [#allocation3], 1
    %1710 = vsyncpa [#allocation8], 1
    %1711 = vsyncpa [#allocation11], 1
    %1712 = vsyncpa [#allocation4], 1
    %1713 = vsyncpa [#allocation5], 1

</llo_original>
